<compile_context>
chip_gen: v7x
topology: tpu7x:2x2x1
jax: 0.10.0
libtpu: 0.0.40
codegen_flags: <defaults>
</compile_context>

<pallas_src>
import functools

import jax
import jax.numpy as jnp
import numpy as np
from jax.experimental import pallas as pl
from jax.experimental.pallas import tpu as pltpu


# ----------------------------- Pallas kernel --------------------------------
def _resnet_block_kernel(x_ref, wx_ref, shift1_ref, w2_ref, bout_ref,
                         sel_ref, mask_ref, out_ref, xpad_ref, apad_ref,
                         *, nb, cin, cout, H, W, compute_dtype):
    """Fused ResNetBlock forward for one grid step of `nb` images.

    x_ref     : (nb, Cin, H*W)          raw (unpadded) input images
    wx_ref    : (2*Cout, 9*Cin)         tap-stacked weights; rows [0:Cout] =
                                        conv1 (BN-scaled), rows [Cout:] = conv11
    shift1_ref: (Cout, 1)               folded conv1 bias + BN shift
    w2_ref    : (Cout, 9*Cout)          tap-stacked conv2 weights
    bout_ref  : (Cout, 1)               b2 + b11 (added after the residual sum)
    sel_ref   : (nb*H*W, nb*Ho*Wo)      block-diag 0/1 stride-2 column selection
    mask_ref  : (9, nb*H*W)             per-tap boundary-validity masks (0/1)
    out_ref   : (Cout, nb*Ho*Wo)        lane-dense (8, 128) output tile
    xpad_ref  : (Cin,  nb*H*W + 2*(W+1)) VMEM halo'd input plane
    apad_ref  : (Cout, nb*H*W + 2*(W+1)) VMEM halo'd activation plane
    """
    HW = H * W
    L = nb * HW                 # dense flattened span handled this grid step
    halo = W + 1                # max |tap shift| in the flattened layout

    # Zero the shift halos every step (megacore/"parallel"-safe: no state is
    # carried across grid steps); the interior [halo, halo+L) is fully
    # overwritten below on every step.
    zx = jnp.zeros((cin, halo), jnp.float32)
    za = jnp.zeros((cout, halo), jnp.float32)
    xpad_ref[:, :halo] = zx
    xpad_ref[:, halo + L:] = zx
    apad_ref[:, :halo] = za
    apad_ref[:, halo + L:] = za

    # Stage this step's images channel-major into the halo'd plane:
    # (nb, Cin, H*W) -> (Cin, nb*H*W), nb lane-dense 256-lane stores.
    for i in range(nb):
        xpad_ref[:, halo + i * HW: halo + (i + 1) * HW] = (
            x_ref[i].astype(jnp.float32))

    masks = mask_ref[...]       # (9, L) f32 {0,1}

    def tap_stack(src_ref):
        # For tap (dy,dx) the contribution to dense output column m comes from
        # plane column m + dy*W + dx (a uniform lane shift thanks to the halo),
        # zeroed by the mask wherever the tap crosses an image / row boundary.
        parts = []
        for t in range(9):
            dy, dx = divmod(t, 3)
            off = dy * W + dx
            parts.append(masks[t:t + 1, :] * src_ref[:, off:off + L])
        return jnp.concatenate(parts, axis=0).astype(compute_dtype)

    # conv1 (BN folded) and conv11 share the input taps: ONE K=9*Cin MXU matmul
    # with the two weight sets stacked on the M side.
    dense = jnp.dot(wx_ref[...], tap_stack(xpad_ref),
                    preferred_element_type=jnp.float32)      # (2*Cout, L)
    c1 = dense[:cout, :]        # stride-1 conv1 (dense)
    c11 = dense[cout:, :]       # conv11 computed densely, stride-2 picked below

    # bn1 (folded) + LeakyReLU(0.01); Dropout is identity in eval mode.
    a = c1 + shift1_ref[...]
    a = jnp.where(a > 0, a, 0.01 * a)                        # f32 epilogue

    # Re-embed the activation for conv2: ONE shifted lane-dense store into the
    # halo'd plane (halo columns already zero).
    apad_ref[:, halo:halo + L] = a

    # conv2: ONE K=9*Cout MXU matmul on the tap-stacked activation.
    c2 = jnp.dot(w2_ref[...], tap_stack(apad_ref),
                 preferred_element_type=jnp.float32)         # (Cout, L)

    # Stride-2 subsample of (conv2 + conv11) with one small 0/1 selection
    # matmul in compute_dtype, then biases; single lane-dense (8,128) store.
    d = (c2 + c11).astype(compute_dtype)
    res = jnp.dot(d, sel_ref[...], preferred_element_type=jnp.float32)
    out_ref[...] = (res + bout_ref[...]).astype(out_ref.dtype)


# ------------------------------- wrapper -------------------------------------
def resnet_block_forward(x_nchw, params, compute_dtype=jnp.float32, nb=2):
    """Full ResNetBlock forward (eval mode). Input/Output are NCHW."""
    N, Cin, H, W = x_nchw.shape
    Cout = params["w1"].shape[-1]
    assert H % 2 == 0 and W % 2 == 0
    HW = H * W
    Ho, Wo = H // 2, W // 2
    Mo = Ho * Wo
    L = nb * HW
    assert (nb * Mo) % 128 == 0, "choose nb so the output tile is lane-dense"

    # Fold eval-mode BatchNorm into conv1's weights + a single shift vector.
    eps = 1e-5
    bn_scale = params["bn_gamma"] / jnp.sqrt(params["bn_var"] + eps)
    bn_shift = params["bn_beta"] - params["bn_mean"] * bn_scale
    shift1 = (params["b1"] * bn_scale + bn_shift).reshape(Cout, 1)
    shift1 = shift1.astype(jnp.float32)
    bout = (params["b2"] + params["b11"]).reshape(Cout, 1).astype(jnp.float32)

    def flat_w(w):               # HWIO (3,3,Ci,Co) -> (Co, 9*Ci), tap-major K
        return jnp.transpose(w, (3, 0, 1, 2)).reshape(w.shape[3], 9 * w.shape[2])

    w1s = flat_w(params["w1"] * bn_scale[None, None, None, :])
    w11 = flat_w(params["w11"])
    wx = jnp.concatenate([w1s, w11], axis=0).astype(compute_dtype)  # (2Co,9Ci)
    w2 = flat_w(params["w2"]).astype(compute_dtype)                 # (Co,9Co)

    # Per-tap validity masks over the dense (unpadded, flattened) output index:
    # tap (dy,dx) at output pixel (h,w) reads input (h+dy-1, w+dx-1).
    hh = jnp.arange(HW) // W
    ww = jnp.arange(HW) % W
    mask_rows = []
    for t in range(9):
        dy, dx = divmod(t, 3)
        ok = ((hh + dy - 1 >= 0) & (hh + dy - 1 < H)
              & (ww + dx - 1 >= 0) & (ww + dx - 1 < W))
        mask_rows.append(jnp.tile(ok, (nb,)))
    mask = jnp.stack(mask_rows, 0).astype(jnp.float32)              # (9, L)

    # Block-diagonal 0/1 stride-2 column selection: dense column -> out column.
    m_local = (2 * jnp.arange(Ho)[:, None] * W
               + 2 * jnp.arange(Wo)[None, :]).reshape(-1)           # (Mo,)
    src = (jnp.arange(nb)[:, None] * HW + m_local[None, :]).reshape(-1)
    sel = (jnp.arange(L)[:, None] == src[None, :]).astype(compute_dtype)

    # Metadata-only reshape (no HBM rewrite); pad a ragged batch up to nb.
    Npad = ((N + nb - 1) // nb) * nb
    xf = x_nchw.reshape(N, Cin, HW).astype(jnp.float32)
    if Npad != N:
        xf = jnp.pad(xf, ((0, Npad - N), (0, 0), (0, 0)))

    grid = (Npad // nb,)
    kernel = functools.partial(_resnet_block_kernel, nb=nb, cin=Cin, cout=Cout,
                               H=H, W=W, compute_dtype=compute_dtype)

    out_t = pl.pallas_call(
        kernel,
        out_shape=jax.ShapeDtypeStruct((Cout, Npad * Mo), jnp.float32),
        grid=grid,
        in_specs=[
            pl.BlockSpec((nb, Cin, HW), lambda i: (i, 0, 0)),        # x batch tile
            pl.BlockSpec((2 * Cout, 9 * Cin), lambda i: (0, 0)),     # conv1+conv11 W
            pl.BlockSpec((Cout, 1), lambda i: (0, 0)),               # folded shift
            pl.BlockSpec((Cout, 9 * Cout), lambda i: (0, 0)),        # conv2 W
            pl.BlockSpec((Cout, 1), lambda i: (0, 0)),               # b2 + b11
            pl.BlockSpec((L, nb * Mo), lambda i: (0, 0)),            # stride-2 select
            pl.BlockSpec((9, L), lambda i: (0, 0)),                  # tap masks
        ],
        out_specs=pl.BlockSpec((Cout, nb * Mo), lambda i: (0, i)),
        scratch_shapes=[
            pltpu.VMEM((Cin, L + 2 * (W + 1)), jnp.float32),         # halo'd input
            pltpu.VMEM((Cout, L + 2 * (W + 1)), jnp.float32),        # halo'd activation
        ],
        compiler_params=pltpu.CompilerParams(
            dimension_semantics=("parallel",)),
    )(xf, wx, shift1, w2, bout, sel, mask)

    # (Cout, Npad*Ho*Wo) -> NCHW (drop batch padding).
    out = out_t.reshape(Cout, Npad, Ho, Wo)[:, :N].transpose(1, 0, 2, 3)
    return out


# ---------------------------- pure-JAX reference ------------------------------
def _conv_ref(x_nhwc, w_hwio, b, stride):
    out = jax.lax.conv_general_dilated(
        x_nhwc, w_hwio, window_strides=(stride, stride),
        padding=((1, 1), (1, 1)),
        dimension_numbers=("NHWC", "HWIO", "NHWC"))
    return out + b


def resnet_block_reference(x_nchw, params):
    x = jnp.transpose(x_nchw, (0, 2, 3, 1))
    eps = 1e-5
    c1 = _conv_ref(x, params["w1"], params["b1"], 1)
    bn = ((c1 - params["bn_mean"]) / jnp.sqrt(params["bn_var"] + eps)
          * params["bn_gamma"] + params["bn_beta"])
    act = jnp.where(bn > 0, bn, 0.01 * bn)
    c2 = _conv_ref(act, params["w2"], params["b2"], 2)
    c11 = _conv_ref(x, params["w11"], params["b11"], 2)
    out = c2 + c11
    return jnp.transpose(out, (0, 3, 1, 2))


# --------------------------------- main ---------------------------------------
if __name__ == "__main__":
    N, in_depth, depth, S = 2, 4, 8, 16
    key = jax.random.PRNGKey(0)
    ks = jax.random.split(key, 12)

    # Deterministic synthetic parameters (HWIO weight layout).
    params = {
        "w1": jax.random.normal(ks[0], (3, 3, in_depth, depth), jnp.float32) * 0.1,
        "b1": jax.random.normal(ks[1], (depth,), jnp.float32) * 0.1,
        "w2": jax.random.normal(ks[2], (3, 3, depth, depth), jnp.float32) * 0.1,
        "b2": jax.random.normal(ks[3], (depth,), jnp.float32) * 0.1,
        "w11": jax.random.normal(ks[4], (3, 3, in_depth, depth), jnp.float32) * 0.1,
        "b11": jax.random.normal(ks[5], (depth,), jnp.float32) * 0.1,
        "bn_gamma": 1.0 + 0.1 * jax.random.normal(ks[6], (depth,), jnp.float32),
        "bn_beta": 0.1 * jax.random.normal(ks[7], (depth,), jnp.float32),
        "bn_mean": 0.1 * jax.random.normal(ks[8], (depth,), jnp.float32),
        "bn_var": 1.0 + 0.1 * jax.random.uniform(ks[9], (depth,), jnp.float32),
    }

    x = jax.random.normal(ks[10], (N, in_depth, S, S), jnp.float32)   # NCHW

    ref = jax.block_until_ready(resnet_block_reference(x, params))
    fwd = jax.jit(resnet_block_forward, static_argnames=("compute_dtype", "nb"))

    # f32 operands: strict correctness check against the pure-JAX reference.
    out_f32 = jax.block_until_ready(fwd(x, params, compute_dtype=jnp.float32))
    assert out_f32.shape == (N, depth, S // 2, S // 2), out_f32.shape
    np.testing.assert_allclose(np.asarray(out_f32), np.asarray(ref),
                               rtol=2e-3, atol=2e-3)

    # bf16 MXU operands (f32 accumulate / f32 epilogue): the perf configuration.
    out_bf16 = jax.block_until_ready(fwd(x, params, compute_dtype=jnp.bfloat16))
    np.testing.assert_allclose(np.asarray(out_bf16), np.asarray(ref),
                               rtol=5e-2, atol=5e-2)

    # Ragged batch + multi-step grid (exercises pipelining / megacore path):
    # N=5 -> padded to 6 -> grid=(3,), nb=2 images per step.
    x5 = jax.random.normal(ks[11], (5, in_depth, S, S), jnp.float32)
    ref5 = jax.block_until_ready(resnet_block_reference(x5, params))
    out5 = jax.block_until_ready(fwd(x5, params, compute_dtype=jnp.float32))
    np.testing.assert_allclose(np.asarray(out5), np.asarray(ref5),
                               rtol=2e-3, atol=2e-3)

    print("KERNEL_OK")
</pallas_src>

<mosaic_0001>
module attributes {stable_mosaic.version = 11 : i64} {
  func.func @_resnet_block_kernel(%arg0: i32, %arg1: memref<2x4x256xf32, #tpu.memory_space<vmem>>, %arg2: memref<16x36xf32, #tpu.memory_space<vmem>>, %arg3: memref<8x1xf32, #tpu.memory_space<vmem>>, %arg4: memref<8x72xf32, #tpu.memory_space<vmem>>, %arg5: memref<8x1xf32, #tpu.memory_space<vmem>>, %arg6: memref<512x128xf32, #tpu.memory_space<vmem>>, %arg7: memref<9x512xf32, #tpu.memory_space<vmem>>, %arg8: memref<8x128xf32, #tpu.memory_space<vmem>>, %arg9: memref<4x546xf32, #tpu.memory_space<vmem>>, %arg10: memref<8x546xf32, #tpu.memory_space<vmem>>) attributes {dimension_semantics = [#tpu.dimension_semantics<parallel>], iteration_bounds = array<i64: 1>, scalar_prefetch = 0 : i64, scratch_operands = 2 : i64, tpu.core_type = #tpu.core_type<tc>, window_params = [{transform_indices = @transform_0, window_bounds = array<i64: 2, 4, 256>}, {pipeline_mode = #tpu.pipeline_mode<synchronous>, transform_indices = @transform_1, window_bounds = array<i64: 16, 36>}, {pipeline_mode = #tpu.pipeline_mode<synchronous>, transform_indices = @transform_2, window_bounds = array<i64: 8, 1>}, {pipeline_mode = #tpu.pipeline_mode<synchronous>, transform_indices = @transform_3, window_bounds = array<i64: 8, 72>}, {pipeline_mode = #tpu.pipeline_mode<synchronous>, transform_indices = @transform_4, window_bounds = array<i64: 8, 1>}, {pipeline_mode = #tpu.pipeline_mode<synchronous>, transform_indices = @transform_5, window_bounds = array<i64: 512, 128>}, {pipeline_mode = #tpu.pipeline_mode<synchronous>, transform_indices = @transform_6, window_bounds = array<i64: 9, 512>}, {transform_indices = @transform_7, window_bounds = array<i64: 8, 128>}]} {
    %cst = arith.constant 0.000000e+00 : f32
    %0 = vector.broadcast %cst : f32 to vector<4x17xf32>
    %cst_0 = arith.constant 0.000000e+00 : f32
    %1 = vector.broadcast %cst_0 : f32 to vector<8x17xf32>
    %c0 = arith.constant 0 : index
    %c0_1 = arith.constant 0 : index
    %2 = vector.load %arg9[%c0, %c0_1] : memref<4x546xf32, #tpu.memory_space<vmem>>, vector<4x17xf32>
    tpu.vector_store %arg9[%c0, %c0_1], %0 {strides = array<i32>} : memref<4x546xf32, #tpu.memory_space<vmem>>, vector<4x17xf32>,
    %c0_2 = arith.constant 0 : index
    %c529 = arith.constant 529 : index
    %3 = vector.load %arg9[%c0_2, %c529] : memref<4x546xf32, #tpu.memory_space<vmem>>, vector<4x17xf32>
    tpu.vector_store %arg9[%c0_2, %c529], %0 {strides = array<i32>} : memref<4x546xf32, #tpu.memory_space<vmem>>, vector<4x17xf32>,
    %c0_3 = arith.constant 0 : index
    %c0_4 = arith.constant 0 : index
    %4 = vector.load %arg10[%c0_3, %c0_4] : memref<8x546xf32, #tpu.memory_space<vmem>>, vector<8x17xf32>
    tpu.vector_store %arg10[%c0_3, %c0_4], %1 {strides = array<i32>} : memref<8x546xf32, #tpu.memory_space<vmem>>, vector<8x17xf32>,
    %c0_5 = arith.constant 0 : index
    %c529_6 = arith.constant 529 : index
    %5 = vector.load %arg10[%c0_5, %c529_6] : memref<8x546xf32, #tpu.memory_space<vmem>>, vector<8x17xf32>
    tpu.vector_store %arg10[%c0_5, %c529_6], %1 {strides = array<i32>} : memref<8x546xf32, #tpu.memory_space<vmem>>, vector<8x17xf32>,
    %c0_7 = arith.constant 0 : index
    %c0_8 = arith.constant 0 : index
    %c0_9 = arith.constant 0 : index
    %6 = vector.load %arg1[%c0_7, %c0_8, %c0_9] : memref<2x4x256xf32, #tpu.memory_space<vmem>>, vector<1x4x256xf32>
    %7 = vector.shape_cast %6 : vector<1x4x256xf32> to vector<4x256xf32>
    %c0_10 = arith.constant 0 : index
    %c17 = arith.constant 17 : index
    %8 = vector.load %arg9[%c0_10, %c17] : memref<4x546xf32, #tpu.memory_space<vmem>>, vector<4x256xf32>
    tpu.vector_store %arg9[%c0_10, %c17], %7 {strides = array<i32>} : memref<4x546xf32, #tpu.memory_space<vmem>>, vector<4x256xf32>,
    %c1 = arith.constant 1 : index
    %c0_11 = arith.constant 0 : index
    %c0_12 = arith.constant 0 : index
    %9 = vector.load %arg1[%c1, %c0_11, %c0_12] : memref<2x4x256xf32, #tpu.memory_space<vmem>>, vector<1x4x256xf32>
    %10 = vector.shape_cast %9 : vector<1x4x256xf32> to vector<4x256xf32>
    %c0_13 = arith.constant 0 : index
    %c273 = arith.constant 273 : index
    %11 = vector.load %arg9[%c0_13, %c273] : memref<4x546xf32, #tpu.memory_space<vmem>>, vector<4x256xf32>
    tpu.vector_store %arg9[%c0_13, %c273], %10 {strides = array<i32>} : memref<4x546xf32, #tpu.memory_space<vmem>>, vector<4x256xf32>,
    %c0_14 = arith.constant 0 : index
    %c0_15 = arith.constant 0 : index
    %12 = vector.load %arg7[%c0_14, %c0_15] : memref<9x512xf32, #tpu.memory_space<vmem>>, vector<9x512xf32>
    %c0_16 = arith.constant 0 : index
    %c0_17 = arith.constant 0 : index
    %13 = vector.load %arg2[%c0_16, %c0_17] : memref<16x36xf32, #tpu.memory_space<vmem>>, vector<16x36xf32>
    %14 = vector.extract_strided_slice %12 {offsets = [0, 0], sizes = [1, 512], strides = [1, 1]} : vector<9x512xf32> to vector<1x512xf32>
    %c0_18 = arith.constant 0 : index
    %c0_19 = arith.constant 0 : index
    %15 = vector.load %arg9[%c0_18, %c0_19] : memref<4x546xf32, #tpu.memory_space<vmem>>, vector<4x512xf32>
    %16 = vector.broadcast %14 : vector<1x512xf32> to vector<4x512xf32>
    %17 = arith.mulf %16, %15 : vector<4x512xf32>
    %18 = vector.extract_strided_slice %12 {offsets = [1, 0], sizes = [1, 512], strides = [1, 1]} : vector<9x512xf32> to vector<1x512xf32>
    %c0_20 = arith.constant 0 : index
    %c1_21 = arith.constant 1 : index
    %19 = vector.load %arg9[%c0_20, %c1_21] : memref<4x546xf32, #tpu.memory_space<vmem>>, vector<4x512xf32>
    %20 = vector.broadcast %18 : vector<1x512xf32> to vector<4x512xf32>
    %21 = arith.mulf %20, %19 : vector<4x512xf32>
    %22 = vector.extract_strided_slice %12 {offsets = [2, 0], sizes = [1, 512], strides = [1, 1]} : vector<9x512xf32> to vector<1x512xf32>
    %c0_22 = arith.constant 0 : index
    %c2 = arith.constant 2 : index
    %23 = vector.load %arg9[%c0_22, %c2] : memref<4x546xf32, #tpu.memory_space<vmem>>, vector<4x512xf32>
    %24 = vector.broadcast %22 : vector<1x512xf32> to vector<4x512xf32>
    %25 = arith.mulf %24, %23 : vector<4x512xf32>
    %26 = vector.extract_strided_slice %12 {offsets = [3, 0], sizes = [1, 512], strides = [1, 1]} : vector<9x512xf32> to vector<1x512xf32>
    %c0_23 = arith.constant 0 : index
    %c16 = arith.constant 16 : index
    %27 = vector.load %arg9[%c0_23, %c16] : memref<4x546xf32, #tpu.memory_space<vmem>>, vector<4x512xf32>
    %28 = vector.broadcast %26 : vector<1x512xf32> to vector<4x512xf32>
    %29 = arith.mulf %28, %27 : vector<4x512xf32>
    %30 = vector.extract_strided_slice %12 {offsets = [4, 0], sizes = [1, 512], strides = [1, 1]} : vector<9x512xf32> to vector<1x512xf32>
    %c0_24 = arith.constant 0 : index
    %c17_25 = arith.constant 17 : index
    %31 = vector.load %arg9[%c0_24, %c17_25] : memref<4x546xf32, #tpu.memory_space<vmem>>, vector<4x512xf32>
    %32 = vector.broadcast %30 : vector<1x512xf32> to vector<4x512xf32>
    %33 = arith.mulf %32, %31 : vector<4x512xf32>
    %34 = vector.extract_strided_slice %12 {offsets = [5, 0], sizes = [1, 512], strides = [1, 1]} : vector<9x512xf32> to vector<1x512xf32>
    %c0_26 = arith.constant 0 : index
    %c18 = arith.constant 18 : index
    %35 = vector.load %arg9[%c0_26, %c18] : memref<4x546xf32, #tpu.memory_space<vmem>>, vector<4x512xf32>
    %36 = vector.broadcast %34 : vector<1x512xf32> to vector<4x512xf32>
    %37 = arith.mulf %36, %35 : vector<4x512xf32>
    %38 = vector.extract_strided_slice %12 {offsets = [6, 0], sizes = [1, 512], strides = [1, 1]} : vector<9x512xf32> to vector<1x512xf32>
    %c0_27 = arith.constant 0 : index
    %c32 = arith.constant 32 : index
    %39 = vector.load %arg9[%c0_27, %c32] : memref<4x546xf32, #tpu.memory_space<vmem>>, vector<4x512xf32>
    %40 = vector.broadcast %38 : vector<1x512xf32> to vector<4x512xf32>
    %41 = arith.mulf %40, %39 : vector<4x512xf32>
    %42 = vector.extract_strided_slice %12 {offsets = [7, 0], sizes = [1, 512], strides = [1, 1]} : vector<9x512xf32> to vector<1x512xf32>
    %c0_28 = arith.constant 0 : index
    %c33 = arith.constant 33 : index
    %43 = vector.load %arg9[%c0_28, %c33] : memref<4x546xf32, #tpu.memory_space<vmem>>, vector<4x512xf32>
    %44 = vector.broadcast %42 : vector<1x512xf32> to vector<4x512xf32>
    %45 = arith.mulf %44, %43 : vector<4x512xf32>
    %46 = vector.extract_strided_slice %12 {offsets = [8, 0], sizes = [1, 512], strides = [1, 1]} : vector<9x512xf32> to vector<1x512xf32>
    %c0_29 = arith.constant 0 : index
    %c34 = arith.constant 34 : index
    %47 = vector.load %arg9[%c0_29, %c34] : memref<4x546xf32, #tpu.memory_space<vmem>>, vector<4x512xf32>
    %48 = vector.broadcast %46 : vector<1x512xf32> to vector<4x512xf32>
    %49 = arith.mulf %48, %47 : vector<4x512xf32>
    %50 = tpu.concatenate %17, %21, %25, %29, %33, %37, %41, %45, %49 in 0 : vector<4x512xf32>, vector<4x512xf32>, vector<4x512xf32>, vector<4x512xf32>, vector<4x512xf32>, vector<4x512xf32>, vector<4x512xf32>, vector<4x512xf32>, vector<4x512xf32> -> vector<36x512xf32>
    %cst_30 = arith.constant dense<0.000000e+00> : vector<16x512xf32>
    %51 = tpu.matmul %13, %50, %cst_30 {dimension_numbers = #tpu.dot_dimension_numbers<[1], [0], [0], [1], [0, 0, 1, 1], [], []>} : vector<16x36xf32>, vector<36x512xf32>, vector<16x512xf32> -> vector<16x512xf32>
    %52 = vector.extract_strided_slice %51 {offsets = [0, 0], sizes = [8, 512], strides = [1, 1]} : vector<16x512xf32> to vector<8x512xf32>
    %53 = vector.extract_strided_slice %51 {offsets = [8, 0], sizes = [8, 512], strides = [1, 1]} : vector<16x512xf32> to vector<8x512xf32>
    %c0_31 = arith.constant 0 : index
    %c0_32 = arith.constant 0 : index
    %54 = vector.load %arg3[%c0_31, %c0_32] : memref<8x1xf32, #tpu.memory_space<vmem>>, vector<8x1xf32>
    %55 = vector.broadcast %54 : vector<8x1xf32> to vector<8x512xf32>
    %56 = arith.addf %52, %55 : vector<8x512xf32>
    %cst_33 = arith.constant 0.000000e+00 : f32
    %57 = vector.broadcast %cst_33 : f32 to vector<8x512xf32>
    %58 = arith.cmpf ogt, %56, %57 : vector<8x512xf32>
    %cst_34 = arith.constant 0.00999999977 : f32
    %59 = vector.broadcast %cst_34 : f32 to vector<8x512xf32>
    %60 = arith.mulf %59, %56 : vector<8x512xf32>
    %61 = arith.select %58, %56, %60 : vector<8x512xi1>, vector<8x512xf32>
    %c0_35 = arith.constant 0 : index
    %c17_36 = arith.constant 17 : index
    %62 = vector.load %arg10[%c0_35, %c17_36] : memref<8x546xf32, #tpu.memory_space<vmem>>, vector<8x512xf32>
    tpu.vector_store %arg10[%c0_35, %c17_36], %61 {strides = array<i32>} : memref<8x546xf32, #tpu.memory_space<vmem>>, vector<8x512xf32>,
    %c0_37 = arith.constant 0 : index
    %c0_38 = arith.constant 0 : index
    %63 = vector.load %arg4[%c0_37, %c0_38] : memref<8x72xf32, #tpu.memory_space<vmem>>, vector<8x72xf32>
    %64 = vector.extract_strided_slice %12 {offsets = [0, 0], sizes = [1, 512], strides = [1, 1]} : vector<9x512xf32> to vector<1x512xf32>
    %c0_39 = arith.constant 0 : index
    %c0_40 = arith.constant 0 : index
    %65 = vector.load %arg10[%c0_39, %c0_40] : memref<8x546xf32, #tpu.memory_space<vmem>>, vector<8x512xf32>
    %66 = vector.broadcast %64 : vector<1x512xf32> to vector<8x512xf32>
    %67 = arith.mulf %66, %65 : vector<8x512xf32>
    %68 = vector.extract_strided_slice %12 {offsets = [1, 0], sizes = [1, 512], strides = [1, 1]} : vector<9x512xf32> to vector<1x512xf32>
    %c0_41 = arith.constant 0 : index
    %c1_42 = arith.constant 1 : index
    %69 = vector.load %arg10[%c0_41, %c1_42] : memref<8x546xf32, #tpu.memory_space<vmem>>, vector<8x512xf32>
    %70 = vector.broadcast %68 : vector<1x512xf32> to vector<8x512xf32>
    %71 = arith.mulf %70, %69 : vector<8x512xf32>
    %72 = vector.extract_strided_slice %12 {offsets = [2, 0], sizes = [1, 512], strides = [1, 1]} : vector<9x512xf32> to vector<1x512xf32>
    %c0_43 = arith.constant 0 : index
    %c2_44 = arith.constant 2 : index
    %73 = vector.load %arg10[%c0_43, %c2_44] : memref<8x546xf32, #tpu.memory_space<vmem>>, vector<8x512xf32>
    %74 = vector.broadcast %72 : vector<1x512xf32> to vector<8x512xf32>
    %75 = arith.mulf %74, %73 : vector<8x512xf32>
    %76 = vector.extract_strided_slice %12 {offsets = [3, 0], sizes = [1, 512], strides = [1, 1]} : vector<9x512xf32> to vector<1x512xf32>
    %c0_45 = arith.constant 0 : index
    %c16_46 = arith.constant 16 : index
    %77 = vector.load %arg10[%c0_45, %c16_46] : memref<8x546xf32, #tpu.memory_space<vmem>>, vector<8x512xf32>
    %78 = vector.broadcast %76 : vector<1x512xf32> to vector<8x512xf32>
    %79 = arith.mulf %78, %77 : vector<8x512xf32>
    %80 = vector.extract_strided_slice %12 {offsets = [4, 0], sizes = [1, 512], strides = [1, 1]} : vector<9x512xf32> to vector<1x512xf32>
    %c0_47 = arith.constant 0 : index
    %c17_48 = arith.constant 17 : index
    %81 = vector.load %arg10[%c0_47, %c17_48] : memref<8x546xf32, #tpu.memory_space<vmem>>, vector<8x512xf32>
    %82 = vector.broadcast %80 : vector<1x512xf32> to vector<8x512xf32>
    %83 = arith.mulf %82, %81 : vector<8x512xf32>
    %84 = vector.extract_strided_slice %12 {offsets = [5, 0], sizes = [1, 512], strides = [1, 1]} : vector<9x512xf32> to vector<1x512xf32>
    %c0_49 = arith.constant 0 : index
    %c18_50 = arith.constant 18 : index
    %85 = vector.load %arg10[%c0_49, %c18_50] : memref<8x546xf32, #tpu.memory_space<vmem>>, vector<8x512xf32>
    %86 = vector.broadcast %84 : vector<1x512xf32> to vector<8x512xf32>
    %87 = arith.mulf %86, %85 : vector<8x512xf32>
    %88 = vector.extract_strided_slice %12 {offsets = [6, 0], sizes = [1, 512], strides = [1, 1]} : vector<9x512xf32> to vector<1x512xf32>
    %c0_51 = arith.constant 0 : index
    %c32_52 = arith.constant 32 : index
    %89 = vector.load %arg10[%c0_51, %c32_52] : memref<8x546xf32, #tpu.memory_space<vmem>>, vector<8x512xf32>
    %90 = vector.broadcast %88 : vector<1x512xf32> to vector<8x512xf32>
    %91 = arith.mulf %90, %89 : vector<8x512xf32>
    %92 = vector.extract_strided_slice %12 {offsets = [7, 0], sizes = [1, 512], strides = [1, 1]} : vector<9x512xf32> to vector<1x512xf32>
    %c0_53 = arith.constant 0 : index
    %c33_54 = arith.constant 33 : index
    %93 = vector.load %arg10[%c0_53, %c33_54] : memref<8x546xf32, #tpu.memory_space<vmem>>, vector<8x512xf32>
    %94 = vector.broadcast %92 : vector<1x512xf32> to vector<8x512xf32>
    %95 = arith.mulf %94, %93 : vector<8x512xf32>
    %96 = vector.extract_strided_slice %12 {offsets = [8, 0], sizes = [1, 512], strides = [1, 1]} : vector<9x512xf32> to vector<1x512xf32>
    %c0_55 = arith.constant 0 : index
    %c34_56 = arith.constant 34 : index
    %97 = vector.load %arg10[%c0_55, %c34_56] : memref<8x546xf32, #tpu.memory_space<vmem>>, vector<8x512xf32>
    %98 = vector.broadcast %96 : vector<1x512xf32> to vector<8x512xf32>
    %99 = arith.mulf %98, %97 : vector<8x512xf32>
    %100 = tpu.concatenate %67, %71, %75, %79, %83, %87, %91, %95, %99 in 0 : vector<8x512xf32>, vector<8x512xf32>, vector<8x512xf32>, vector<8x512xf32>, vector<8x512xf32>, vector<8x512xf32>, vector<8x512xf32>, vector<8x512xf32>, vector<8x512xf32> -> vector<72x512xf32>
    %cst_57 = arith.constant dense<0.000000e+00> : vector<8x512xf32>
    %101 = tpu.matmul %63, %100, %cst_57 {dimension_numbers = #tpu.dot_dimension_numbers<[1], [0], [0], [1], [0, 0, 1, 1], [], []>} : vector<8x72xf32>, vector<72x512xf32>, vector<8x512xf32> -> vector<8x512xf32>
    %102 = arith.addf %101, %53 : vector<8x512xf32>
    %c0_58 = arith.constant 0 : index
    %c0_59 = arith.constant 0 : index
    %103 = vector.load %arg6[%c0_58, %c0_59] : memref<512x128xf32, #tpu.memory_space<vmem>>, vector<512x128xf32>
    %cst_60 = arith.constant dense<0.000000e+00> : vector<8x128xf32>
    %104 = tpu.matmul %102, %103, %cst_60 {dimension_numbers = #tpu.dot_dimension_numbers<[1], [0], [0], [1], [0, 0, 1, 1], [], []>} : vector<8x512xf32>, vector<512x128xf32>, vector<8x128xf32> -> vector<8x128xf32>
    %c0_61 = arith.constant 0 : index
    %c0_62 = arith.constant 0 : index
    %105 = vector.load %arg5[%c0_61, %c0_62] : memref<8x1xf32, #tpu.memory_space<vmem>>, vector<8x1xf32>
    %106 = vector.broadcast %105 : vector<8x1xf32> to vector<8x128xf32>
    %107 = arith.addf %104, %106 : vector<8x128xf32>
    %c0_63 = arith.constant 0 : index
    %c0_64 = arith.constant 0 : index
    %108 = vector.load %arg8[%c0_63, %c0_64] : memref<8x128xf32, #tpu.memory_space<vmem>>, vector<8x128xf32>
    tpu.vector_store %arg8[%c0_63, %c0_64], %107 {strides = array<i32>} : memref<8x128xf32, #tpu.memory_space<vmem>>, vector<8x128xf32>,
    return
  }
  func.func @transform_0(%arg0: i32) -> (i32, i32, i32) {
    %c0_i32 = arith.constant 0 : i32
    %c0_i32_0 = arith.constant 0 : i32
    %c0_i32_1 = arith.constant 0 : i32
    return %arg0, %c0_i32, %c0_i32_0 : i32, i32, i32
  }
  func.func @transform_1(%arg0: i32) -> (i32, i32) {
    %c0_i32 = arith.constant 0 : i32
    %c0_i32_0 = arith.constant 0 : i32
    %c0_i32_1 = arith.constant 0 : i32
    return %c0_i32, %c0_i32_0 : i32, i32
  }
  func.func @transform_2(%arg0: i32) -> (i32, i32) {
    %c0_i32 = arith.constant 0 : i32
    %c0_i32_0 = arith.constant 0 : i32
    %c0_i32_1 = arith.constant 0 : i32
    return %c0_i32, %c0_i32_0 : i32, i32
  }
  func.func @transform_3(%arg0: i32) -> (i32, i32) {
    %c0_i32 = arith.constant 0 : i32
    %c0_i32_0 = arith.constant 0 : i32
    %c0_i32_1 = arith.constant 0 : i32
    return %c0_i32, %c0_i32_0 : i32, i32
  }
  func.func @transform_4(%arg0: i32) -> (i32, i32) {
    %c0_i32 = arith.constant 0 : i32
    %c0_i32_0 = arith.constant 0 : i32
    %c0_i32_1 = arith.constant 0 : i32
    return %c0_i32, %c0_i32_0 : i32, i32
  }
  func.func @transform_5(%arg0: i32) -> (i32, i32) {
    %c0_i32 = arith.constant 0 : i32
    %c0_i32_0 = arith.constant 0 : i32
    %c0_i32_1 = arith.constant 0 : i32
    return %c0_i32, %c0_i32_0 : i32, i32
  }
  func.func @transform_6(%arg0: i32) -> (i32, i32) {
    %c0_i32 = arith.constant 0 : i32
    %c0_i32_0 = arith.constant 0 : i32
    %c0_i32_1 = arith.constant 0 : i32
    return %c0_i32, %c0_i32_0 : i32, i32
  }
  func.func @transform_7(%arg0: i32) -> (i32, i32) {
    %c0_i32 = arith.constant 0 : i32
    %c0_i32_0 = arith.constant 0 : i32
    return %c0_i32, %arg0 : i32, i32
  }
}

</mosaic_0001>

<llo_original>
// kernel: resnet_block_forward.1
$region0: #{resnet_block_forward.1}
  #allocation0 [shape = 'u32[]', space=smem, size = 0x4, offset = 0x4, fixed_abs, tag = 'smem constant byte address 0x4 - core index']
  #allocation1 [shape = 'u32[144,128]{1,0:T(1,128)}', space=vmem, size = 0x12000, scoped, tag = 'internal scratch']
  #allocation2 [shape = 'f32[4,546]{1,0:T(4,128)}', space=vmem, size = 0x2800, scoped, tag = 'scratch operand']
  #allocation3 [shape = 'f32[8,546]{1,0:T(8,128)}', space=vmem, size = 0x5000, scoped, tag = 'scratch operand']
  %s0 = inlined_call_operand.vmem [shape: f32[2,4,256], index: 0, kind: input, shape index: {}]
  %s1 = inlined_call_operand.vmem [shape: f32[16,36], index: 1, kind: input, shape index: {}]
  %s2 = inlined_call_operand.vmem [shape: f32[8,1], index: 2, kind: input, shape index: {}]
  %s3 = inlined_call_operand.vmem [shape: f32[8,72], index: 3, kind: input, shape index: {}]
  %s4 = inlined_call_operand.vmem [shape: f32[8,1], index: 4, kind: input, shape index: {}]
  %s5 = inlined_call_operand.vmem [shape: f32[512,128], index: 5, kind: input, shape index: {}]
  %s6 = inlined_call_operand.vmem [shape: f32[9,512], index: 6, kind: input, shape index: {}]
  %s7 = inlined_call_operand.vmem [shape: f32[8,128], index: 7, kind: output, shape index: {}]
  %s8 = sld [smem:[#allocation0]]
  $region38: #{resnet_block_forward.1} parent=0
    _
  %s10 = ssub.s32 1, %s8
  %s11 = scalar_select 0, %s10, %s8
  // Predicated region
  $region2: #{resnet_block_forward.1} parent=0 // pred_check
    _
  $region3: #{resnet_block_forward.1} parent=0 // pred_check_branch
    %13 = sbr.rel (0) target = $region5
  $region4: #{resnet_block_forward.1} parent=0 // pred_region
    _
  $region5: #{resnet_block_forward.1} parent=0 // pred_fallthru
    _
  // Predicated region
  $region6: #{resnet_block_forward.1} parent=0 // pred_check
    _
  $region7: #{resnet_block_forward.1} parent=0 // pred_check_branch
    %15 = sbr.rel (0) target = $region9
  $region8: #{resnet_block_forward.1} parent=0 // pred_region
    _
  $region9: #{resnet_block_forward.1} parent=0 // pred_fallthru
    _
  // Predicated region
  $region10: #{resnet_block_forward.1} parent=0 // pred_check
    _
  $region11: #{resnet_block_forward.1} parent=0 // pred_check_branch
    %17 = sbr.rel (0) target = $region13
  $region12: #{resnet_block_forward.1} parent=0 // pred_region
    _
  $region13: #{resnet_block_forward.1} parent=0 // pred_fallthru
    _
  // Predicated region
  $region14: #{resnet_block_forward.1} parent=0 // pred_check
    _
  $region15: #{resnet_block_forward.1} parent=0 // pred_check_branch
    %19 = sbr.rel (0) target = $region17
  $region16: #{resnet_block_forward.1} parent=0 // pred_region
    _
  $region17: #{resnet_block_forward.1} parent=0 // pred_fallthru
    _
  // Predicated region
  $region18: #{resnet_block_forward.1} parent=0 // pred_check
    _
  $region19: #{resnet_block_forward.1} parent=0 // pred_check_branch
    %21 = sbr.rel (0) target = $region21
  $region20: #{resnet_block_forward.1} parent=0 // pred_region
    _
  $region21: #{resnet_block_forward.1} parent=0 // pred_fallthru
    _
  // Predicated region
  $region22: #{resnet_block_forward.1} parent=0 // pred_check
    _
  $region23: #{resnet_block_forward.1} parent=0 // pred_check_branch
    %23 = sbr.rel (0) target = $region25
  $region24: #{resnet_block_forward.1} parent=0 // pred_region
    _
  $region25: #{resnet_block_forward.1} parent=0 // pred_fallthru
    _
  // Predicated region
  $region26: #{resnet_block_forward.1} parent=0 // pred_check
    _
  $region27: #{resnet_block_forward.1} parent=0 // pred_check_branch
    %25 = sbr.rel (0) target = $region29
  $region28: #{resnet_block_forward.1} parent=0 // pred_region
    _
  $region29: #{resnet_block_forward.1} parent=0 // pred_fallthru
    _
  %vm26 = vcmask 134144
  %27 = vst.msk [vmem:[#allocation2] sm:$0xf] %vm26, 0.0
  %vm28 = vcmask 273544
  %29 = vst.msk [vmem:[#allocation2 + $0x10] sm:$0xf] %vm28, 0.0
  %vm30 = vcmask 138240
  %31 = vst.msk [vmem:[#allocation3] sm:$0xff] %vm30, 0.0
  %vm32 = vcmask 277640
  %33 = vst.msk [vmem:[#allocation3 + $0x20] sm:$0xff] %vm32, 0.0
  %v34 = vld [vmem:[%s0] sm:$0xff]
  %36 = vrot.lane.b32.xlu0 %v34, 17
  %v37 = vpop.permute.xlu0 %36
  %v38 = vrot.slane %v37, 4
  %v39 = vsel %vm30, %v38, %v37
  %vm42 = vcmask 1043592
  %vm43 = vcmask 1047556
  %vm44 = vmor %vm43, %vm42
  %45 = vst.msk [vmem:[#allocation2] sm:$0xff] %vm44, %v39
  %46 = vst.msk [vmem:[#allocation2 + $0x8] sm:$0xf] %vm26, %v38
  %s47 = scalar_lea.vmem %s0, 8
  %v48 = vld [vmem:[%s47] sm:$0xff]
  %50 = vrot.lane.b32.xlu0 %v48, 17
  %v51 = vpop.permute.xlu0 %50
  %v52 = vrot.slane %v51, 4
  %v53 = vsel %vm30, %v52, %v51
  %56 = vst.msk [vmem:[#allocation2 + $0x8] sm:$0xff] %vm44, %v53
  %57 = vst.msk [vmem:[#allocation2 + $0x10] sm:$0xf] %vm26, %v52
  %v58 = vld [vmem:[%s6] sm:$0xff]
  %v59 = vld [vmem:[%s6 + $0x8] sm:$0xff]
  %v60 = vld [vmem:[%s6 + $0x10] sm:$0xff]
  %v61 = vld [vmem:[%s6 + $0x18] sm:$0xff]
  %v62 = vld [vmem:[%s6 + $0x20] sm:$0x1]
  %v63 = vld [vmem:[%s6 + $0x28] sm:$0x1]
  %v64 = vld [vmem:[%s6 + $0x30] sm:$0x1]
  %v65 = vld [vmem:[%s6 + $0x38] sm:$0x1]
  %v66 = vld [vmem:[%s1] sm:$0xff]
  %v67 = vld [vmem:[%s1 + $0x8] sm:$0xff]
  %v68 = vld [vmem:[#allocation2] sm:$0xff]
  %v69 = vld [vmem:[#allocation2 + $0x8] sm:$0xff]
  %v70 = vlaneseq
  %v71 = vshrl.u32 %v70, 7
  %v72 = vsub.s32 0, %v71
  %v73 = vrot.slane %v58, %v72
  %v74 = vlaneseq
  %v75 = vshrl.u32 %v74, 7
  %v76 = vsub.s32 0, %v75
  %v77 = vrot.slane %v59, %v76
  %v78 = vlaneseq
  %v79 = vshrl.u32 %v78, 7
  %v80 = vsub.s32 0, %v79
  %v81 = vrot.slane %v60, %v80
  %v82 = vlaneseq
  %v83 = vshrl.u32 %v82, 7
  %v84 = vsub.s32 0, %v83
  %v85 = vrot.slane %v61, %v84
  %v88 = vcombine.high %v68, %v68
  %v89 = vcombine.high %v69, %v69
  %v92 = vmul.f32 %v73, %v68
  %v93 = vmul.f32 %v77, %v88
  %v94 = vmul.f32 %v81, %v69
  %v95 = vmul.f32 %v85, %v89
  %v96 = vld [vmem:[#allocation2 + $0x10] sm:$0xf]
  %v97 = vlaneseq
  %v98 = vshrl.u32 %v97, 7
  %v99 = vsub.s32 1, %v98
  %v100 = vrot.slane %v58, %v99
  %v101 = vlaneseq
  %v102 = vshrl.u32 %v101, 7
  %v103 = vsub.s32 1, %v102
  %v104 = vrot.slane %v59, %v103
  %v105 = vlaneseq
  %v106 = vshrl.u32 %v105, 7
  %v107 = vsub.s32 1, %v106
  %v108 = vrot.slane %v60, %v107
  %v109 = vlaneseq
  %v110 = vshrl.u32 %v109, 7
  %v111 = vsub.s32 1, %v110
  %v112 = vrot.slane %v61, %v111
  %114 = vrot.lane.b32.xlu0 %v68, 127
  %v115 = vpop.permute.xlu0 %114
  %116 = vrot.lane.b32.xlu0 %v88, 127
  %v117 = vpop.permute.xlu0 %116
  %118 = vrot.lane.b32.xlu0 %v69, 127
  %v119 = vpop.permute.xlu0 %118
  %120 = vrot.lane.b32.xlu0 %v89, 127
  %v121 = vpop.permute.xlu0 %120
  %122 = vrot.lane.b32.xlu0 %v96, 127
  %v123 = vpop.permute.xlu0 %122
  %vm124 = vcmask 1039360
  %v125 = vsel %vm124, %v115, %v117
  %v126 = vsel %vm124, %v117, %v119
  %v127 = vsel %vm124, %v119, %v121
  %v128 = vsel %vm124, %v121, %v123
  %v133 = vmul.f32 %v100, %v125
  %v134 = vmul.f32 %v104, %v126
  %v135 = vmul.f32 %v108, %v127
  %v136 = vmul.f32 %v112, %v128
  %v137 = vlaneseq
  %v138 = vshrl.u32 %v137, 7
  %v139 = vsub.s32 2, %v138
  %v140 = vrot.slane %v58, %v139
  %v141 = vlaneseq
  %v142 = vshrl.u32 %v141, 7
  %v143 = vsub.s32 2, %v142
  %v144 = vrot.slane %v59, %v143
  %v145 = vlaneseq
  %v146 = vshrl.u32 %v145, 7
  %v147 = vsub.s32 2, %v146
  %v148 = vrot.slane %v60, %v147
  %v149 = vlaneseq
  %v150 = vshrl.u32 %v149, 7
  %v151 = vsub.s32 2, %v150
  %v152 = vrot.slane %v61, %v151
  %153 = vrot.lane.b32.xlu0 %v68, 126
  %v154 = vpop.permute.xlu0 %153
  %155 = vrot.lane.b32.xlu0 %v88, 126
  %v156 = vpop.permute.xlu0 %155
  %157 = vrot.lane.b32.xlu0 %v69, 126
  %v158 = vpop.permute.xlu0 %157
  %159 = vrot.lane.b32.xlu0 %v89, 126
  %v160 = vpop.permute.xlu0 %159
  %161 = vrot.lane.b32.xlu0 %v96, 126
  %v162 = vpop.permute.xlu0 %161
  %vm163 = vcmask 1031168
  %v164 = vsel %vm163, %v154, %v156
  %v165 = vsel %vm163, %v156, %v158
  %v166 = vsel %vm163, %v158, %v160
  %v167 = vsel %vm163, %v160, %v162
  %v172 = vmul.f32 %v140, %v164
  %v173 = vmul.f32 %v144, %v165
  %v174 = vmul.f32 %v148, %v166
  %v175 = vmul.f32 %v152, %v167
  %v176 = vlaneseq
  %v177 = vshrl.u32 %v176, 7
  %v178 = vsub.s32 3, %v177
  %v179 = vrot.slane %v58, %v178
  %v180 = vlaneseq
  %v181 = vshrl.u32 %v180, 7
  %v182 = vsub.s32 3, %v181
  %v183 = vrot.slane %v59, %v182
  %v184 = vlaneseq
  %v185 = vshrl.u32 %v184, 7
  %v186 = vsub.s32 3, %v185
  %v187 = vrot.slane %v60, %v186
  %v188 = vlaneseq
  %v189 = vshrl.u32 %v188, 7
  %v190 = vsub.s32 3, %v189
  %v191 = vrot.slane %v61, %v190
  %192 = vrot.lane.b32.xlu0 %v68, 112
  %v193 = vpop.permute.xlu0 %192
  %194 = vrot.lane.b32.xlu0 %v88, 112
  %v195 = vpop.permute.xlu0 %194
  %196 = vrot.lane.b32.xlu0 %v69, 112
  %v197 = vpop.permute.xlu0 %196
  %198 = vrot.lane.b32.xlu0 %v89, 112
  %v199 = vpop.permute.xlu0 %198
  %200 = vrot.lane.b32.xlu0 %v96, 112
  %v201 = vpop.permute.xlu0 %200
  %vm202 = vcmask 916480
  %v203 = vsel %vm202, %v193, %v195
  %v204 = vsel %vm202, %v195, %v197
  %v205 = vsel %vm202, %v197, %v199
  %v206 = vsel %vm202, %v199, %v201
  %v211 = vmul.f32 %v179, %v203
  %v212 = vmul.f32 %v183, %v204
  %v213 = vmul.f32 %v187, %v205
  %v214 = vmul.f32 %v191, %v206
  %v215 = vlaneseq
  %v216 = vshrl.u32 %v215, 7
  %v217 = vsub.s32 4, %v216
  %v218 = vrot.slane %v58, %v217
  %v219 = vlaneseq
  %v220 = vshrl.u32 %v219, 7
  %v221 = vsub.s32 4, %v220
  %v222 = vrot.slane %v59, %v221
  %v223 = vlaneseq
  %v224 = vshrl.u32 %v223, 7
  %v225 = vsub.s32 4, %v224
  %v226 = vrot.slane %v60, %v225
  %v227 = vlaneseq
  %v228 = vshrl.u32 %v227, 7
  %v229 = vsub.s32 4, %v228
  %v230 = vrot.slane %v61, %v229
  %231 = vrot.lane.b32.xlu0 %v68, 111
  %v232 = vpop.permute.xlu0 %231
  %233 = vrot.lane.b32.xlu0 %v88, 111
  %v234 = vpop.permute.xlu0 %233
  %235 = vrot.lane.b32.xlu0 %v69, 111
  %v236 = vpop.permute.xlu0 %235
  %237 = vrot.lane.b32.xlu0 %v89, 111
  %v238 = vpop.permute.xlu0 %237
  %239 = vrot.lane.b32.xlu0 %v96, 111
  %v240 = vpop.permute.xlu0 %239
  %vm241 = vcmask 908288
  %v242 = vsel %vm241, %v232, %v234
  %v243 = vsel %vm241, %v234, %v236
  %v244 = vsel %vm241, %v236, %v238
  %v245 = vsel %vm241, %v238, %v240
  %v250 = vmul.f32 %v218, %v242
  %v251 = vmul.f32 %v222, %v243
  %v252 = vmul.f32 %v226, %v244
  %v253 = vmul.f32 %v230, %v245
  %v254 = vlaneseq
  %v255 = vshrl.u32 %v254, 7
  %v256 = vsub.s32 5, %v255
  %v257 = vrot.slane %v58, %v256
  %v258 = vlaneseq
  %v259 = vshrl.u32 %v258, 7
  %v260 = vsub.s32 5, %v259
  %v261 = vrot.slane %v59, %v260
  %v262 = vlaneseq
  %v263 = vshrl.u32 %v262, 7
  %v264 = vsub.s32 5, %v263
  %v265 = vrot.slane %v60, %v264
  %v266 = vlaneseq
  %v267 = vshrl.u32 %v266, 7
  %v268 = vsub.s32 5, %v267
  %v269 = vrot.slane %v61, %v268
  %270 = vrot.lane.b32.xlu0 %v68, 110
  %v271 = vpop.permute.xlu0 %270
  %272 = vrot.lane.b32.xlu0 %v88, 110
  %v273 = vpop.permute.xlu0 %272
  %274 = vrot.lane.b32.xlu0 %v69, 110
  %v275 = vpop.permute.xlu0 %274
  %276 = vrot.lane.b32.xlu0 %v89, 110
  %v277 = vpop.permute.xlu0 %276
  %278 = vrot.lane.b32.xlu0 %v96, 110
  %v279 = vpop.permute.xlu0 %278
  %vm280 = vcmask 900096
  %v281 = vsel %vm280, %v271, %v273
  %v282 = vsel %vm280, %v273, %v275
  %v283 = vsel %vm280, %v275, %v277
  %v284 = vsel %vm280, %v277, %v279
  %v289 = vmul.f32 %v257, %v281
  %v290 = vmul.f32 %v261, %v282
  %v291 = vmul.f32 %v265, %v283
  %v292 = vmul.f32 %v269, %v284
  %v293 = vlaneseq
  %v294 = vshrl.u32 %v293, 7
  %v295 = vsub.s32 6, %v294
  %v296 = vrot.slane %v58, %v295
  %v297 = vlaneseq
  %v298 = vshrl.u32 %v297, 7
  %v299 = vsub.s32 6, %v298
  %v300 = vrot.slane %v59, %v299
  %v301 = vlaneseq
  %v302 = vshrl.u32 %v301, 7
  %v303 = vsub.s32 6, %v302
  %v304 = vrot.slane %v60, %v303
  %v305 = vlaneseq
  %v306 = vshrl.u32 %v305, 7
  %v307 = vsub.s32 6, %v306
  %v308 = vrot.slane %v61, %v307
  %309 = vrot.lane.b32.xlu0 %v68, 96
  %v310 = vpop.permute.xlu0 %309
  %311 = vrot.lane.b32.xlu0 %v88, 96
  %v312 = vpop.permute.xlu0 %311
  %313 = vrot.lane.b32.xlu0 %v69, 96
  %v314 = vpop.permute.xlu0 %313
  %315 = vrot.lane.b32.xlu0 %v89, 96
  %v316 = vpop.permute.xlu0 %315
  %317 = vrot.lane.b32.xlu0 %v96, 96
  %v318 = vpop.permute.xlu0 %317
  %vm319 = vcmask 785408
  %v320 = vsel %vm319, %v310, %v312
  %v321 = vsel %vm319, %v312, %v314
  %v322 = vsel %vm319, %v314, %v316
  %v323 = vsel %vm319, %v316, %v318
  %v328 = vmul.f32 %v296, %v320
  %v329 = vmul.f32 %v300, %v321
  %v330 = vmul.f32 %v304, %v322
  %v331 = vmul.f32 %v308, %v323
  %v332 = vlaneseq
  %v333 = vshrl.u32 %v332, 7
  %v334 = vsub.s32 7, %v333
  %v335 = vrot.slane %v58, %v334
  %v336 = vlaneseq
  %v337 = vshrl.u32 %v336, 7
  %v338 = vsub.s32 7, %v337
  %v339 = vrot.slane %v59, %v338
  %v340 = vlaneseq
  %v341 = vshrl.u32 %v340, 7
  %v342 = vsub.s32 7, %v341
  %v343 = vrot.slane %v60, %v342
  %v344 = vlaneseq
  %v345 = vshrl.u32 %v344, 7
  %v346 = vsub.s32 7, %v345
  %v347 = vrot.slane %v61, %v346
  %348 = vrot.lane.b32.xlu0 %v68, 95
  %v349 = vpop.permute.xlu0 %348
  %350 = vrot.lane.b32.xlu0 %v88, 95
  %v351 = vpop.permute.xlu0 %350
  %352 = vrot.lane.b32.xlu0 %v69, 95
  %v353 = vpop.permute.xlu0 %352
  %354 = vrot.lane.b32.xlu0 %v89, 95
  %v355 = vpop.permute.xlu0 %354
  %356 = vrot.lane.b32.xlu0 %v96, 95
  %v357 = vpop.permute.xlu0 %356
  %vm358 = vcmask 777216
  %v359 = vsel %vm358, %v349, %v351
  %v360 = vsel %vm358, %v351, %v353
  %v361 = vsel %vm358, %v353, %v355
  %v362 = vsel %vm358, %v355, %v357
  %v367 = vmul.f32 %v335, %v359
  %v368 = vmul.f32 %v339, %v360
  %v369 = vmul.f32 %v343, %v361
  %v370 = vmul.f32 %v347, %v362
  %v371 = vlaneseq
  %v372 = vshrl.u32 %v371, 7
  %v373 = vsub.s32 0, %v372
  %v374 = vrot.slane %v62, %v373
  %v375 = vlaneseq
  %v376 = vshrl.u32 %v375, 7
  %v377 = vsub.s32 0, %v376
  %v378 = vrot.slane %v63, %v377
  %v379 = vlaneseq
  %v380 = vshrl.u32 %v379, 7
  %v381 = vsub.s32 0, %v380
  %v382 = vrot.slane %v64, %v381
  %v383 = vlaneseq
  %v384 = vshrl.u32 %v383, 7
  %v385 = vsub.s32 0, %v384
  %v386 = vrot.slane %v65, %v385
  %387 = vrot.lane.b32.xlu0 %v68, 94
  %v388 = vpop.permute.xlu0 %387
  %389 = vrot.lane.b32.xlu0 %v88, 94
  %v390 = vpop.permute.xlu0 %389
  %391 = vrot.lane.b32.xlu0 %v69, 94
  %v392 = vpop.permute.xlu0 %391
  %393 = vrot.lane.b32.xlu0 %v89, 94
  %v394 = vpop.permute.xlu0 %393
  %395 = vrot.lane.b32.xlu0 %v96, 94
  %v396 = vpop.permute.xlu0 %395
  %vm397 = vcmask 769024
  %v398 = vsel %vm397, %v388, %v390
  %v399 = vsel %vm397, %v390, %v392
  %v400 = vsel %vm397, %v392, %v394
  %v401 = vsel %vm397, %v394, %v396
  %v406 = vmul.f32 %v374, %v398
  %v407 = vmul.f32 %v378, %v399
  %v408 = vmul.f32 %v382, %v400
  %v409 = vmul.f32 %v386, %v401
  %v414 = vrot.slane %v133, 4
  %v415 = vrot.slane %v134, 4
  %v416 = vrot.slane %v135, 4
  %v417 = vrot.slane %v136, 4
  %v426 = vrot.slane %v211, 4
  %v427 = vrot.slane %v212, 4
  %v428 = vrot.slane %v213, 4
  %v429 = vrot.slane %v214, 4
  %v438 = vrot.slane %v289, 4
  %v439 = vrot.slane %v290, 4
  %v440 = vrot.slane %v291, 4
  %v441 = vrot.slane %v292, 4
  %v450 = vrot.slane %v367, 4
  %v451 = vrot.slane %v368, 4
  %v452 = vrot.slane %v369, 4
  %v453 = vrot.slane %v370, 4
  %vm458 = vcmask 1043456
  %v459 = vsel %vm458, %v92, %v414
  %v460 = vsel %vm458, %v93, %v415
  %v461 = vsel %vm458, %v94, %v416
  %v462 = vsel %vm458, %v95, %v417
  %v463 = vsel %vm458, %v172, %v426
  %v464 = vsel %vm458, %v173, %v427
  %v465 = vsel %vm458, %v174, %v428
  %v466 = vsel %vm458, %v175, %v429
  %v467 = vsel %vm458, %v250, %v438
  %v468 = vsel %vm458, %v251, %v439
  %v469 = vsel %vm458, %v252, %v440
  %v470 = vsel %vm458, %v253, %v441
  %v471 = vsel %vm458, %v328, %v450
  %v472 = vsel %vm458, %v329, %v451
  %v473 = vsel %vm458, %v330, %v452
  %v474 = vsel %vm458, %v331, %v453
  %vm475 = vcmask 293888
  %v477 = vsel %vm475, %v66, 0
  %v480 = vsel %vm475, %v67, 0
  %v483 = vsel %vm458, %v406, 0
  %v486 = vsel %vm458, %v407, 0
  %v489 = vsel %vm458, %v408, 0
  %v492 = vsel %vm458, %v409, 0
  %494 = vmatprep.subr.mxu0 %v460
  %495 = vmatpush1.msra.mxu0 %v459
  %496 = vmatprep.subr.mxu0 %v464
  %497 = vmatpush1.msra.mxu0 %v463
  %498 = vmatprep.subr.mxu0 %v468
  %499 = vmatpush1.msra.mxu0 %v467
  %500 = vmatprep.subr.mxu0 %v472
  %501 = vmatpush1.msra.mxu0 %v471
  %502 = vmatprep.subr.mxu0 %v486
  %503 = vmatpush1.msra.mxu0 %v483
  %504 = vmatprep.subr.mxu0 0.0
  %505 = vmatpush1.msra.mxu0 0.0
  %506 = vmatprep.subr.mxu0 0.0
  %507 = vmatpush1.msra.mxu0 0.0
  %508 = vmatprep.subr.mxu0 0.0
  %509 = vmatpush1.msra.mxu0 0.0
  %510 = vmatprep.subr.mxu0 0.0
  %511 = vmatpush1.msra.mxu0 0.0
  %512 = vmatprep.subr.mxu0 0.0
  %513 = vmatpush1.msra.mxu0 0.0
  %514 = vmatprep.subr.mxu0 0.0
  %515 = vmatpush1.msra.mxu0 0.0
  %516 = vmatprep.subr.mxu0 0.0
  %517 = vmatpush1.msra.mxu0 0.0
  %518 = vmatprep.subr.mxu0 0.0
  %519 = vmatpush1.msra.mxu0 0.0
  %520 = vmatprep.subr.mxu0 0.0
  %521 = vmatpush1.msra.mxu0 0.0
  %522 = vmatprep.subr.mxu0 0.0
  %523 = vmatpush1.msra.mxu0 0.0
  %524 = vmatprep.subr.mxu0 0.0
  %525 = vmatpush1.msra.mxu0 0.0
  %526 = vmatprep.subr.mxu0 0.0
  %527 = vmatpush1.msra.mxu0 0.0
  %528 = vmatprep.subr.mxu0 0.0
  %529 = vmatpush1.msra.mxu0 0.0
  %530 = vmatprep.subr.mxu0 0.0
  %531 = vmatpush1.msra.mxu0 0.0
  %532 = vmatprep.subr.mxu0 0.0
  %533 = vmatpush1.msra.mxu0 0.0
  %534 = vmatprep.subr.mxu0 0.0
  %535 = vmatpush1.msra.mxu0 0.0
  %536 = vmatprep.subr.mxu0 0.0
  %537 = vmatpush1.msra.mxu0 0.0
  %538 = vmatprep.subr.mxu0 0.0
  %539 = vmatpush1.msra.mxu0 0.0
  %540 = vmatprep.subr.mxu0 0.0
  %541 = vmatpush1.msra.mxu0 0.0
  %542 = vmatprep.subr.mxu0 0.0
  %543 = vmatpush1.msra.mxu0 0.0
  %544 = vmatprep.subr.mxu0 0.0
  %545 = vmatpush1.msra.mxu0 0.0
  %546 = vmatprep.subr.mxu0 0.0
  %547 = vmatpush1.msra.mxu0 0.0
  %548 = vmatprep.subr.mxu0 0.0
  %549 = vmatpush1.msra.mxu0 0.0
  %550 = vmatprep.subr.mxu0 0.0
  %551 = vmatpush1.msra.mxu0 0.0
  %552 = vmatprep.subr.mxu0 0.0
  %553 = vmatpush1.msra.mxu0 0.0
  %554 = vmatprep.subr.mxu0 0.0
  %555 = vmatpush1.msra.mxu0 0.0
  %556 = vmatprep.subr.mxu0 0.0
  %557 = vmatpush1.msra.mxu0 0.0
  %558 = vmatprep.mubr.f32.mxu0 0.0
  %559 = vmatmul.mubr.f32.gmra.mrb[0].mxu0 %v477
  %v560 = vpop.f32.mrb[0].mxu0
  %v561 = vadd.f32 0.0, %v560
  %v562 = vpop.f32.mrb[0].mxu0
  %v563 = vadd.f32 0.0, %v562
  %564 = vmatprep.mubr.f32.mxu0 0.0
  %565 = vmatmul.mubr.f32.gmra.mrb[0].mxu0 %v480
  %v566 = vpop.f32.mrb[0].mxu0
  %v567 = vadd.f32 0.0, %v566
  %v568 = vpop.f32.mrb[0].mxu0
  %v569 = vadd.f32 0.0, %v568
  %570 = vdwg.mxu0
  %571 = vmatprep.subr.mxu0 %v462
  %572 = vmatpush1.msra.mxu0 %v461
  %573 = vmatprep.subr.mxu0 %v466
  %574 = vmatpush1.msra.mxu0 %v465
  %575 = vmatprep.subr.mxu0 %v470
  %576 = vmatpush1.msra.mxu0 %v469
  %577 = vmatprep.subr.mxu0 %v474
  %578 = vmatpush1.msra.mxu0 %v473
  %579 = vmatprep.subr.mxu0 %v492
  %580 = vmatpush1.msra.mxu0 %v489
  %581 = vmatprep.subr.mxu0 0.0
  %582 = vmatpush1.msra.mxu0 0.0
  %583 = vmatprep.subr.mxu0 0.0
  %584 = vmatpush1.msra.mxu0 0.0
  %585 = vmatprep.subr.mxu0 0.0
  %586 = vmatpush1.msra.mxu0 0.0
  %587 = vmatprep.subr.mxu0 0.0
  %588 = vmatpush1.msra.mxu0 0.0
  %589 = vmatprep.subr.mxu0 0.0
  %590 = vmatpush1.msra.mxu0 0.0
  %591 = vmatprep.subr.mxu0 0.0
  %592 = vmatpush1.msra.mxu0 0.0
  %593 = vmatprep.subr.mxu0 0.0
  %594 = vmatpush1.msra.mxu0 0.0
  %595 = vmatprep.subr.mxu0 0.0
  %596 = vmatpush1.msra.mxu0 0.0
  %597 = vmatprep.subr.mxu0 0.0
  %598 = vmatpush1.msra.mxu0 0.0
  %599 = vmatprep.subr.mxu0 0.0
  %600 = vmatpush1.msra.mxu0 0.0
  %601 = vmatprep.subr.mxu0 0.0
  %602 = vmatpush1.msra.mxu0 0.0
  %603 = vmatprep.subr.mxu0 0.0
  %604 = vmatpush1.msra.mxu0 0.0
  %605 = vmatprep.subr.mxu0 0.0
  %606 = vmatpush1.msra.mxu0 0.0
  %607 = vmatprep.subr.mxu0 0.0
  %608 = vmatpush1.msra.mxu0 0.0
  %609 = vmatprep.subr.mxu0 0.0
  %610 = vmatpush1.msra.mxu0 0.0
  %611 = vmatprep.subr.mxu0 0.0
  %612 = vmatpush1.msra.mxu0 0.0
  %613 = vmatprep.subr.mxu0 0.0
  %614 = vmatpush1.msra.mxu0 0.0
  %615 = vmatprep.subr.mxu0 0.0
  %616 = vmatpush1.msra.mxu0 0.0
  %617 = vmatprep.subr.mxu0 0.0
  %618 = vmatpush1.msra.mxu0 0.0
  %619 = vmatprep.subr.mxu0 0.0
  %620 = vmatpush1.msra.mxu0 0.0
  %621 = vmatprep.subr.mxu0 0.0
  %622 = vmatpush1.msra.mxu0 0.0
  %623 = vmatprep.subr.mxu0 0.0
  %624 = vmatpush1.msra.mxu0 0.0
  %625 = vmatprep.subr.mxu0 0.0
  %626 = vmatpush1.msra.mxu0 0.0
  %627 = vmatprep.subr.mxu0 0.0
  %628 = vmatpush1.msra.mxu0 0.0
  %629 = vmatprep.subr.mxu0 0.0
  %630 = vmatpush1.msra.mxu0 0.0
  %631 = vmatprep.subr.mxu0 0.0
  %632 = vmatpush1.msra.mxu0 0.0
  %633 = vmatprep.subr.mxu0 0.0
  %634 = vmatpush1.msra.mxu0 0.0
  %635 = vmatprep.mubr.f32.mxu0 0.0
  %636 = vmatmul.mubr.f32.gmra.mrb[0].mxu0 %v477
  %v637 = vpop.f32.mrb[0].mxu0
  %v638 = vadd.f32 0.0, %v637
  %v639 = vpop.f32.mrb[0].mxu0
  %v640 = vadd.f32 0.0, %v639
  %641 = vmatprep.mubr.f32.mxu0 0.0
  %642 = vmatmul.mubr.f32.gmra.mrb[0].mxu0 %v480
  %v643 = vpop.f32.mrb[0].mxu0
  %v644 = vadd.f32 0.0, %v643
  %v645 = vpop.f32.mrb[0].mxu0
  %v646 = vadd.f32 0.0, %v645
  %647 = vdwg.mxu0
  %v648 = vld [vmem:[%s2] sm:$0xff]
  %650 = vset.pattern.permute.xlu0 0
  %651 = vperm.xlu0 %650, %v648
  %v652 = vpop.permute.xlu0 %651
  %v654 = vadd.f32 %v561, %v652
  %v655 = vadd.f32 %v563, %v652
  %v656 = vadd.f32 %v638, %v652
  %v657 = vadd.f32 %v640, %v652
  %vm658 = vcmp.gt.f32.partialorder %v654, 0.0
  %vm659 = vcmp.gt.f32.partialorder %v655, 0.0
  %vm660 = vcmp.gt.f32.partialorder %v656, 0.0
  %vm661 = vcmp.gt.f32.partialorder %v657, 0.0
  %v662 = vmul.f32 %v654, 0.01
  %v663 = vmul.f32 %v655, 0.01
  %v664 = vmul.f32 %v656, 0.01
  %v665 = vmul.f32 %v657, 0.01
  %v666 = vsel %vm658, %v654, %v662
  %v667 = vsel %vm659, %v655, %v663
  %v668 = vsel %vm660, %v656, %v664
  %v669 = vsel %vm661, %v657, %v665
  %674 = vrot.lane.b32.xlu0 %v666, 17
  %v675 = vpop.permute.xlu0 %674
  %676 = vrot.lane.b32.xlu0 %v667, 17
  %v677 = vpop.permute.xlu0 %676
  %678 = vrot.lane.b32.xlu0 %v668, 17
  %v679 = vpop.permute.xlu0 %678
  %680 = vrot.lane.b32.xlu0 %v669, 17
  %v681 = vpop.permute.xlu0 %680
  %v682 = vsel %vm30, %v675, %v677
  %v683 = vsel %vm30, %v677, %v679
  %v684 = vsel %vm30, %v679, %v681
  %vm690 = vcmask 1047688
  %691 = vst.msk [vmem:[#allocation3] sm:$0xff] %vm690, %v675
  %692 = vst [vmem:[#allocation3 + $0x8] sm:$0xff] %v682
  %693 = vst [vmem:[#allocation3 + $0x10] sm:$0xff] %v683
  %694 = vst [vmem:[#allocation3 + $0x18] sm:$0xff] %v684
  %695 = vst.msk [vmem:[#allocation3 + $0x20] sm:$0xff] %vm30, %v681
  %v696 = vld [vmem:[%s3] sm:$0xff]
  %v697 = vld [vmem:[#allocation3] sm:$0xff]
  %v698 = vld [vmem:[#allocation3 + $0x8] sm:$0xff]
  %v699 = vld [vmem:[#allocation3 + $0x10] sm:$0xff]
  %v700 = vld [vmem:[#allocation3 + $0x18] sm:$0xff]
  %v701 = vmul.f32 %v73, %v697
  %v702 = vmul.f32 %v77, %v698
  %v703 = vmul.f32 %v81, %v699
  %v704 = vmul.f32 %v85, %v700
  %v705 = vld [vmem:[#allocation3 + $0x20] sm:$0xff]
  %711 = vrot.lane.b32.xlu0 %v697, 127
  %v712 = vpop.permute.xlu0 %711
  %713 = vrot.lane.b32.xlu0 %v698, 127
  %v714 = vpop.permute.xlu0 %713
  %715 = vrot.lane.b32.xlu0 %v699, 127
  %v716 = vpop.permute.xlu0 %715
  %717 = vrot.lane.b32.xlu0 %v700, 127
  %v718 = vpop.permute.xlu0 %717
  %719 = vrot.lane.b32.xlu0 %v705, 127
  %v720 = vpop.permute.xlu0 %719
  %v721 = vsel %vm124, %v712, %v714
  %v722 = vsel %vm124, %v714, %v716
  %v723 = vsel %vm124, %v716, %v718
  %v724 = vsel %vm124, %v718, %v720
  %v729 = vmul.f32 %v100, %v721
  %v730 = vmul.f32 %v104, %v722
  %v731 = vmul.f32 %v108, %v723
  %v732 = vmul.f32 %v112, %v724
  %733 = vrot.lane.b32.xlu0 %v697, 126
  %v734 = vpop.permute.xlu0 %733
  %735 = vrot.lane.b32.xlu0 %v698, 126
  %v736 = vpop.permute.xlu0 %735
  %737 = vrot.lane.b32.xlu0 %v699, 126
  %v738 = vpop.permute.xlu0 %737
  %739 = vrot.lane.b32.xlu0 %v700, 126
  %v740 = vpop.permute.xlu0 %739
  %741 = vrot.lane.b32.xlu0 %v705, 126
  %v742 = vpop.permute.xlu0 %741
  %v743 = vsel %vm163, %v734, %v736
  %v744 = vsel %vm163, %v736, %v738
  %v745 = vsel %vm163, %v738, %v740
  %v746 = vsel %vm163, %v740, %v742
  %v751 = vmul.f32 %v140, %v743
  %v752 = vmul.f32 %v144, %v744
  %v753 = vmul.f32 %v148, %v745
  %v754 = vmul.f32 %v152, %v746
  %755 = vrot.lane.b32.xlu0 %v697, 112
  %v756 = vpop.permute.xlu0 %755
  %757 = vrot.lane.b32.xlu0 %v698, 112
  %v758 = vpop.permute.xlu0 %757
  %759 = vrot.lane.b32.xlu0 %v699, 112
  %v760 = vpop.permute.xlu0 %759
  %761 = vrot.lane.b32.xlu0 %v700, 112
  %v762 = vpop.permute.xlu0 %761
  %763 = vrot.lane.b32.xlu0 %v705, 112
  %v764 = vpop.permute.xlu0 %763
  %v765 = vsel %vm202, %v756, %v758
  %v766 = vsel %vm202, %v758, %v760
  %v767 = vsel %vm202, %v760, %v762
  %v768 = vsel %vm202, %v762, %v764
  %v773 = vmul.f32 %v179, %v765
  %v774 = vmul.f32 %v183, %v766
  %v775 = vmul.f32 %v187, %v767
  %v776 = vmul.f32 %v191, %v768
  %777 = vrot.lane.b32.xlu0 %v697, 111
  %v778 = vpop.permute.xlu0 %777
  %779 = vrot.lane.b32.xlu0 %v698, 111
  %v780 = vpop.permute.xlu0 %779
  %781 = vrot.lane.b32.xlu0 %v699, 111
  %v782 = vpop.permute.xlu0 %781
  %783 = vrot.lane.b32.xlu0 %v700, 111
  %v784 = vpop.permute.xlu0 %783
  %785 = vrot.lane.b32.xlu0 %v705, 111
  %v786 = vpop.permute.xlu0 %785
  %v787 = vsel %vm241, %v778, %v780
  %v788 = vsel %vm241, %v780, %v782
  %v789 = vsel %vm241, %v782, %v784
  %v790 = vsel %vm241, %v784, %v786
  %v795 = vmul.f32 %v218, %v787
  %v796 = vmul.f32 %v222, %v788
  %v797 = vmul.f32 %v226, %v789
  %v798 = vmul.f32 %v230, %v790
  %799 = vrot.lane.b32.xlu0 %v697, 110
  %v800 = vpop.permute.xlu0 %799
  %801 = vrot.lane.b32.xlu0 %v698, 110
  %v802 = vpop.permute.xlu0 %801
  %803 = vrot.lane.b32.xlu0 %v699, 110
  %v804 = vpop.permute.xlu0 %803
  %805 = vrot.lane.b32.xlu0 %v700, 110
  %v806 = vpop.permute.xlu0 %805
  %807 = vrot.lane.b32.xlu0 %v705, 110
  %v808 = vpop.permute.xlu0 %807
  %v809 = vsel %vm280, %v800, %v802
  %v810 = vsel %vm280, %v802, %v804
  %v811 = vsel %vm280, %v804, %v806
  %v812 = vsel %vm280, %v806, %v808
  %v817 = vmul.f32 %v257, %v809
  %v818 = vmul.f32 %v261, %v810
  %v819 = vmul.f32 %v265, %v811
  %v820 = vmul.f32 %v269, %v812
  %821 = vrot.lane.b32.xlu0 %v697, 96
  %v822 = vpop.permute.xlu0 %821
  %823 = vrot.lane.b32.xlu0 %v698, 96
  %v824 = vpop.permute.xlu0 %823
  %825 = vrot.lane.b32.xlu0 %v699, 96
  %v826 = vpop.permute.xlu0 %825
  %827 = vrot.lane.b32.xlu0 %v700, 96
  %v828 = vpop.permute.xlu0 %827
  %829 = vrot.lane.b32.xlu0 %v705, 96
  %v830 = vpop.permute.xlu0 %829
  %v831 = vsel %vm319, %v822, %v824
  %v832 = vsel %vm319, %v824, %v826
  %v833 = vsel %vm319, %v826, %v828
  %v834 = vsel %vm319, %v828, %v830
  %v839 = vmul.f32 %v296, %v831
  %v840 = vmul.f32 %v300, %v832
  %v841 = vmul.f32 %v304, %v833
  %v842 = vmul.f32 %v308, %v834
  %843 = vrot.lane.b32.xlu0 %v697, 95
  %v844 = vpop.permute.xlu0 %843
  %845 = vrot.lane.b32.xlu0 %v698, 95
  %v846 = vpop.permute.xlu0 %845
  %847 = vrot.lane.b32.xlu0 %v699, 95
  %v848 = vpop.permute.xlu0 %847
  %849 = vrot.lane.b32.xlu0 %v700, 95
  %v850 = vpop.permute.xlu0 %849
  %851 = vrot.lane.b32.xlu0 %v705, 95
  %v852 = vpop.permute.xlu0 %851
  %v853 = vsel %vm358, %v844, %v846
  %v854 = vsel %vm358, %v846, %v848
  %v855 = vsel %vm358, %v848, %v850
  %v856 = vsel %vm358, %v850, %v852
  %v861 = vmul.f32 %v335, %v853
  %v862 = vmul.f32 %v339, %v854
  %v863 = vmul.f32 %v343, %v855
  %v864 = vmul.f32 %v347, %v856
  %865 = vrot.lane.b32.xlu0 %v697, 94
  %v866 = vpop.permute.xlu0 %865
  %867 = vrot.lane.b32.xlu0 %v698, 94
  %v868 = vpop.permute.xlu0 %867
  %869 = vrot.lane.b32.xlu0 %v699, 94
  %v870 = vpop.permute.xlu0 %869
  %871 = vrot.lane.b32.xlu0 %v700, 94
  %v872 = vpop.permute.xlu0 %871
  %873 = vrot.lane.b32.xlu0 %v705, 94
  %v874 = vpop.permute.xlu0 %873
  %v875 = vsel %vm397, %v866, %v868
  %v876 = vsel %vm397, %v868, %v870
  %v877 = vsel %vm397, %v870, %v872
  %v878 = vsel %vm397, %v872, %v874
  %v883 = vmul.f32 %v374, %v875
  %v884 = vmul.f32 %v378, %v876
  %v885 = vmul.f32 %v382, %v877
  %v886 = vmul.f32 %v386, %v878
  %vm887 = vcmask 588800
  %v889 = vsel %vm887, %v696, 0
  %891 = vmatprep.subr.mxu0 %v702
  %892 = vmatpush1.msra.mxu0 %v701
  %893 = vmatprep.subr.mxu0 %v730
  %894 = vmatpush1.msra.mxu0 %v729
  %895 = vmatprep.subr.mxu0 %v752
  %896 = vmatpush1.msra.mxu0 %v751
  %897 = vmatprep.subr.mxu0 %v774
  %898 = vmatpush1.msra.mxu0 %v773
  %899 = vmatprep.subr.mxu0 %v796
  %900 = vmatpush1.msra.mxu0 %v795
  %901 = vmatprep.subr.mxu0 %v818
  %902 = vmatpush1.msra.mxu0 %v817
  %903 = vmatprep.subr.mxu0 %v840
  %904 = vmatpush1.msra.mxu0 %v839
  %905 = vmatprep.subr.mxu0 %v862
  %906 = vmatpush1.msra.mxu0 %v861
  %907 = vmatprep.subr.mxu0 %v884
  %908 = vmatpush1.msra.mxu0 %v883
  %909 = vmatprep.subr.mxu0 0.0
  %910 = vmatpush1.msra.mxu0 0.0
  %911 = vmatprep.subr.mxu0 0.0
  %912 = vmatpush1.msra.mxu0 0.0
  %913 = vmatprep.subr.mxu0 0.0
  %914 = vmatpush1.msra.mxu0 0.0
  %915 = vmatprep.subr.mxu0 0.0
  %916 = vmatpush1.msra.mxu0 0.0
  %917 = vmatprep.subr.mxu0 0.0
  %918 = vmatpush1.msra.mxu0 0.0
  %919 = vmatprep.subr.mxu0 0.0
  %920 = vmatpush1.msra.mxu0 0.0
  %921 = vmatprep.subr.mxu0 0.0
  %922 = vmatpush1.msra.mxu0 0.0
  %923 = vmatprep.subr.mxu0 0.0
  %924 = vmatpush1.msra.mxu0 0.0
  %925 = vmatprep.subr.mxu0 0.0
  %926 = vmatpush1.msra.mxu0 0.0
  %927 = vmatprep.subr.mxu0 0.0
  %928 = vmatpush1.msra.mxu0 0.0
  %929 = vmatprep.subr.mxu0 0.0
  %930 = vmatpush1.msra.mxu0 0.0
  %931 = vmatprep.subr.mxu0 0.0
  %932 = vmatpush1.msra.mxu0 0.0
  %933 = vmatprep.subr.mxu0 0.0
  %934 = vmatpush1.msra.mxu0 0.0
  %935 = vmatprep.subr.mxu0 0.0
  %936 = vmatpush1.msra.mxu0 0.0
  %937 = vmatprep.subr.mxu0 0.0
  %938 = vmatpush1.msra.mxu0 0.0
  %939 = vmatprep.subr.mxu0 0.0
  %940 = vmatpush1.msra.mxu0 0.0
  %941 = vmatprep.subr.mxu0 0.0
  %942 = vmatpush1.msra.mxu0 0.0
  %943 = vmatprep.subr.mxu0 0.0
  %944 = vmatpush1.msra.mxu0 0.0
  %945 = vmatprep.subr.mxu0 0.0
  %946 = vmatpush1.msra.mxu0 0.0
  %947 = vmatprep.subr.mxu0 0.0
  %948 = vmatpush1.msra.mxu0 0.0
  %949 = vmatprep.subr.mxu0 0.0
  %950 = vmatpush1.msra.mxu0 0.0
  %951 = vmatprep.subr.mxu0 0.0
  %952 = vmatpush1.msra.mxu0 0.0
  %953 = vmatprep.subr.mxu0 0.0
  %954 = vmatpush1.msra.mxu0 0.0
  %955 = vmatprep.mubr.f32.mxu0 0.0
  %956 = vmatmul.mubr.f32.gmra.mrb[0].mxu0 %v889
  %v957 = vpop.f32.mrb[0].mxu0
  %v958 = vadd.f32 %v567, %v957
  %v959 = vpop.f32.mrb[0].mxu0
  %v960 = vadd.f32 %v569, %v959
  %961 = vdwg.mxu0
  %962 = vmatprep.subr.mxu0 %v704
  %963 = vmatpush1.msra.mxu0 %v703
  %964 = vmatprep.subr.mxu0 %v732
  %965 = vmatpush1.msra.mxu0 %v731
  %966 = vmatprep.subr.mxu0 %v754
  %967 = vmatpush1.msra.mxu0 %v753
  %968 = vmatprep.subr.mxu0 %v776
  %969 = vmatpush1.msra.mxu0 %v775
  %970 = vmatprep.subr.mxu0 %v798
  %971 = vmatpush1.msra.mxu0 %v797
  %972 = vmatprep.subr.mxu0 %v820
  %973 = vmatpush1.msra.mxu0 %v819
  %974 = vmatprep.subr.mxu0 %v842
  %975 = vmatpush1.msra.mxu0 %v841
  %976 = vmatprep.subr.mxu0 %v864
  %977 = vmatpush1.msra.mxu0 %v863
  %978 = vmatprep.subr.mxu0 %v886
  %979 = vmatpush1.msra.mxu0 %v885
  %980 = vmatprep.subr.mxu0 0.0
  %981 = vmatpush1.msra.mxu0 0.0
  %982 = vmatprep.subr.mxu0 0.0
  %983 = vmatpush1.msra.mxu0 0.0
  %984 = vmatprep.subr.mxu0 0.0
  %985 = vmatpush1.msra.mxu0 0.0
  %986 = vmatprep.subr.mxu0 0.0
  %987 = vmatpush1.msra.mxu0 0.0
  %988 = vmatprep.subr.mxu0 0.0
  %989 = vmatpush1.msra.mxu0 0.0
  %990 = vmatprep.subr.mxu0 0.0
  %991 = vmatpush1.msra.mxu0 0.0
  %992 = vmatprep.subr.mxu0 0.0
  %993 = vmatpush1.msra.mxu0 0.0
  %994 = vmatprep.subr.mxu0 0.0
  %995 = vmatpush1.msra.mxu0 0.0
  %996 = vmatprep.subr.mxu0 0.0
  %997 = vmatpush1.msra.mxu0 0.0
  %998 = vmatprep.subr.mxu0 0.0
  %999 = vmatpush1.msra.mxu0 0.0
  %1000 = vmatprep.subr.mxu0 0.0
  %1001 = vmatpush1.msra.mxu0 0.0
  %1002 = vmatprep.subr.mxu0 0.0
  %1003 = vmatpush1.msra.mxu0 0.0
  %1004 = vmatprep.subr.mxu0 0.0
  %1005 = vmatpush1.msra.mxu0 0.0
  %1006 = vmatprep.subr.mxu0 0.0
  %1007 = vmatpush1.msra.mxu0 0.0
  %1008 = vmatprep.subr.mxu0 0.0
  %1009 = vmatpush1.msra.mxu0 0.0
  %1010 = vmatprep.subr.mxu0 0.0
  %1011 = vmatpush1.msra.mxu0 0.0
  %1012 = vmatprep.subr.mxu0 0.0
  %1013 = vmatpush1.msra.mxu0 0.0
  %1014 = vmatprep.subr.mxu0 0.0
  %1015 = vmatpush1.msra.mxu0 0.0
  %1016 = vmatprep.subr.mxu0 0.0
  %1017 = vmatpush1.msra.mxu0 0.0
  %1018 = vmatprep.subr.mxu0 0.0
  %1019 = vmatpush1.msra.mxu0 0.0
  %1020 = vmatprep.subr.mxu0 0.0
  %1021 = vmatpush1.msra.mxu0 0.0
  %1022 = vmatprep.subr.mxu0 0.0
  %1023 = vmatpush1.msra.mxu0 0.0
  %1024 = vmatprep.subr.mxu0 0.0
  %1025 = vmatpush1.msra.mxu0 0.0
  %1026 = vmatprep.mubr.f32.mxu0 0.0
  %1027 = vmatmul.mubr.f32.gmra.mrb[0].mxu0 %v889
  %v1028 = vpop.f32.mrb[0].mxu0
  %v1029 = vadd.f32 %v644, %v1028
  %v1030 = vpop.f32.mrb[0].mxu0
  %v1031 = vadd.f32 %v646, %v1030
  %1032 = vdwg.mxu0
  %v1033 = vld [vmem:[%s5] sm:$0xff]
  %v1034 = vld [vmem:[%s5 + $0x8] sm:$0xff]
  %v1035 = vld [vmem:[%s5 + $0x10] sm:$0xff]
  %v1036 = vld [vmem:[%s5 + $0x18] sm:$0xff]
  %v1037 = vld [vmem:[%s5 + $0x20] sm:$0xff]
  %v1038 = vld [vmem:[%s5 + $0x28] sm:$0xff]
  %v1039 = vld [vmem:[%s5 + $0x30] sm:$0xff]
  %v1040 = vld [vmem:[%s5 + $0x38] sm:$0xff]
  %v1041 = vld [vmem:[%s5 + $0x40] sm:$0xff]
  %v1042 = vld [vmem:[%s5 + $0x48] sm:$0xff]
  %v1043 = vld [vmem:[%s5 + $0x50] sm:$0xff]
  %v1044 = vld [vmem:[%s5 + $0x58] sm:$0xff]
  %v1045 = vld [vmem:[%s5 + $0x60] sm:$0xff]
  %v1046 = vld [vmem:[%s5 + $0x68] sm:$0xff]
  %v1047 = vld [vmem:[%s5 + $0x70] sm:$0xff]
  %v1048 = vld [vmem:[%s5 + $0x78] sm:$0xff]
  %v1049 = vld [vmem:[%s5 + $0x80] sm:$0xff]
  %v1050 = vld [vmem:[%s5 + $0x88] sm:$0xff]
  %v1051 = vld [vmem:[%s5 + $0x90] sm:$0xff]
  %v1052 = vld [vmem:[%s5 + $0x98] sm:$0xff]
  %v1053 = vld [vmem:[%s5 + $0xa0] sm:$0xff]
  %v1054 = vld [vmem:[%s5 + $0xa8] sm:$0xff]
  %v1055 = vld [vmem:[%s5 + $0xb0] sm:$0xff]
  %v1056 = vld [vmem:[%s5 + $0xb8] sm:$0xff]
  %v1057 = vld [vmem:[%s5 + $0xc0] sm:$0xff]
  %v1058 = vld [vmem:[%s5 + $0xc8] sm:$0xff]
  %v1059 = vld [vmem:[%s5 + $0xd0] sm:$0xff]
  %v1060 = vld [vmem:[%s5 + $0xd8] sm:$0xff]
  %v1061 = vld [vmem:[%s5 + $0xe0] sm:$0xff]
  %v1062 = vld [vmem:[%s5 + $0xe8] sm:$0xff]
  %v1063 = vld [vmem:[%s5 + $0xf0] sm:$0xff]
  %v1064 = vld [vmem:[%s5 + $0xf8] sm:$0xff]
  %v1065 = vld [vmem:[%s5 + $0x100] sm:$0xff]
  %v1066 = vld [vmem:[%s5 + $0x108] sm:$0xff]
  %v1067 = vld [vmem:[%s5 + $0x110] sm:$0xff]
  %v1068 = vld [vmem:[%s5 + $0x118] sm:$0xff]
  %v1069 = vld [vmem:[%s5 + $0x120] sm:$0xff]
  %v1070 = vld [vmem:[%s5 + $0x128] sm:$0xff]
  %v1071 = vld [vmem:[%s5 + $0x130] sm:$0xff]
  %v1072 = vld [vmem:[%s5 + $0x138] sm:$0xff]
  %v1073 = vld [vmem:[%s5 + $0x140] sm:$0xff]
  %v1074 = vld [vmem:[%s5 + $0x148] sm:$0xff]
  %v1075 = vld [vmem:[%s5 + $0x150] sm:$0xff]
  %v1076 = vld [vmem:[%s5 + $0x158] sm:$0xff]
  %v1077 = vld [vmem:[%s5 + $0x160] sm:$0xff]
  %v1078 = vld [vmem:[%s5 + $0x168] sm:$0xff]
  %v1079 = vld [vmem:[%s5 + $0x170] sm:$0xff]
  %v1080 = vld [vmem:[%s5 + $0x178] sm:$0xff]
  %v1081 = vld [vmem:[%s5 + $0x180] sm:$0xff]
  %v1082 = vld [vmem:[%s5 + $0x188] sm:$0xff]
  %v1083 = vld [vmem:[%s5 + $0x190] sm:$0xff]
  %v1084 = vld [vmem:[%s5 + $0x198] sm:$0xff]
  %v1085 = vld [vmem:[%s5 + $0x1a0] sm:$0xff]
  %v1086 = vld [vmem:[%s5 + $0x1a8] sm:$0xff]
  %v1087 = vld [vmem:[%s5 + $0x1b0] sm:$0xff]
  %v1088 = vld [vmem:[%s5 + $0x1b8] sm:$0xff]
  %v1089 = vld [vmem:[%s5 + $0x1c0] sm:$0xff]
  %v1090 = vld [vmem:[%s5 + $0x1c8] sm:$0xff]
  %v1091 = vld [vmem:[%s5 + $0x1d0] sm:$0xff]
  %v1092 = vld [vmem:[%s5 + $0x1d8] sm:$0xff]
  %v1093 = vld [vmem:[%s5 + $0x1e0] sm:$0xff]
  %v1094 = vld [vmem:[%s5 + $0x1e8] sm:$0xff]
  %v1095 = vld [vmem:[%s5 + $0x1f0] sm:$0xff]
  %v1096 = vld [vmem:[%s5 + $0x1f8] sm:$0xff]
  %v1097 = vld [vmem:[%s4] sm:$0xff]
  %1099 = vset.pattern.permute.xlu0 0
  %1100 = vperm.xlu0 %1099, %v1097
  %v1101 = vpop.permute.xlu0 %1100
  %1103 = vmatprep.subr.mxu0 0.0
  %1104 = vmatpush1.msra.mxu0 %v1033
  %1105 = vmatprep.subr.mxu0 0.0
  %1106 = vmatpush1.msra.mxu0 %v1034
  %1107 = vmatprep.subr.mxu0 0.0
  %1108 = vmatpush1.msra.mxu0 %v1035
  %1109 = vmatprep.subr.mxu0 0.0
  %1110 = vmatpush1.msra.mxu0 %v1036
  %1111 = vmatprep.subr.mxu0 0.0
  %1112 = vmatpush1.msra.mxu0 %v1037
  %1113 = vmatprep.subr.mxu0 0.0
  %1114 = vmatpush1.msra.mxu0 %v1038
  %1115 = vmatprep.subr.mxu0 0.0
  %1116 = vmatpush1.msra.mxu0 %v1039
  %1117 = vmatprep.subr.mxu0 0.0
  %1118 = vmatpush1.msra.mxu0 %v1040
  %1119 = vmatprep.subr.mxu0 0.0
  %1120 = vmatpush1.msra.mxu0 %v1041
  %1121 = vmatprep.subr.mxu0 0.0
  %1122 = vmatpush1.msra.mxu0 %v1042
  %1123 = vmatprep.subr.mxu0 0.0
  %1124 = vmatpush1.msra.mxu0 %v1043
  %1125 = vmatprep.subr.mxu0 0.0
  %1126 = vmatpush1.msra.mxu0 %v1044
  %1127 = vmatprep.subr.mxu0 0.0
  %1128 = vmatpush1.msra.mxu0 %v1045
  %1129 = vmatprep.subr.mxu0 0.0
  %1130 = vmatpush1.msra.mxu0 %v1046
  %1131 = vmatprep.subr.mxu0 0.0
  %1132 = vmatpush1.msra.mxu0 %v1047
  %1133 = vmatprep.subr.mxu0 0.0
  %1134 = vmatpush1.msra.mxu0 %v1048
  %1135 = vmatprep.subr.mxu0 0.0
  %1136 = vmatpush1.msra.mxu0 %v1049
  %1137 = vmatprep.subr.mxu0 0.0
  %1138 = vmatpush1.msra.mxu0 %v1050
  %1139 = vmatprep.subr.mxu0 0.0
  %1140 = vmatpush1.msra.mxu0 %v1051
  %1141 = vmatprep.subr.mxu0 0.0
  %1142 = vmatpush1.msra.mxu0 %v1052
  %1143 = vmatprep.subr.mxu0 0.0
  %1144 = vmatpush1.msra.mxu0 %v1053
  %1145 = vmatprep.subr.mxu0 0.0
  %1146 = vmatpush1.msra.mxu0 %v1054
  %1147 = vmatprep.subr.mxu0 0.0
  %1148 = vmatpush1.msra.mxu0 %v1055
  %1149 = vmatprep.subr.mxu0 0.0
  %1150 = vmatpush1.msra.mxu0 %v1056
  %1151 = vmatprep.subr.mxu0 0.0
  %1152 = vmatpush1.msra.mxu0 %v1057
  %1153 = vmatprep.subr.mxu0 0.0
  %1154 = vmatpush1.msra.mxu0 %v1058
  %1155 = vmatprep.subr.mxu0 0.0
  %1156 = vmatpush1.msra.mxu0 %v1059
  %1157 = vmatprep.subr.mxu0 0.0
  %1158 = vmatpush1.msra.mxu0 %v1060
  %1159 = vmatprep.subr.mxu0 0.0
  %1160 = vmatpush1.msra.mxu0 %v1061
  %1161 = vmatprep.subr.mxu0 0.0
  %1162 = vmatpush1.msra.mxu0 %v1062
  %1163 = vmatprep.subr.mxu0 0.0
  %1164 = vmatpush1.msra.mxu0 %v1063
  %1165 = vmatprep.subr.mxu0 0.0
  %1166 = vmatpush1.msra.mxu0 %v1064
  %1167 = vmatprep.mubr.f32.mxu0 %v960
  %1168 = vmatmul.mubr.f32.gmra.mrb[0].mxu0 %v958
  %v1169 = vpop.f32.mrb[0].mxu0
  %v1170 = vadd.f32 %v1101, %v1169
  %v1171 = vpop.f32.mrb[0].mxu0
  %1172 = vdwg.mxu0
  %1173 = vmatprep.subr.mxu0 0.0
  %1174 = vmatpush1.msra.mxu0 %v1065
  %1175 = vmatprep.subr.mxu0 0.0
  %1176 = vmatpush1.msra.mxu0 %v1066
  %1177 = vmatprep.subr.mxu0 0.0
  %1178 = vmatpush1.msra.mxu0 %v1067
  %1179 = vmatprep.subr.mxu0 0.0
  %1180 = vmatpush1.msra.mxu0 %v1068
  %1181 = vmatprep.subr.mxu0 0.0
  %1182 = vmatpush1.msra.mxu0 %v1069
  %1183 = vmatprep.subr.mxu0 0.0
  %1184 = vmatpush1.msra.mxu0 %v1070
  %1185 = vmatprep.subr.mxu0 0.0
  %1186 = vmatpush1.msra.mxu0 %v1071
  %1187 = vmatprep.subr.mxu0 0.0
  %1188 = vmatpush1.msra.mxu0 %v1072
  %1189 = vmatprep.subr.mxu0 0.0
  %1190 = vmatpush1.msra.mxu0 %v1073
  %1191 = vmatprep.subr.mxu0 0.0
  %1192 = vmatpush1.msra.mxu0 %v1074
  %1193 = vmatprep.subr.mxu0 0.0
  %1194 = vmatpush1.msra.mxu0 %v1075
  %1195 = vmatprep.subr.mxu0 0.0
  %1196 = vmatpush1.msra.mxu0 %v1076
  %1197 = vmatprep.subr.mxu0 0.0
  %1198 = vmatpush1.msra.mxu0 %v1077
  %1199 = vmatprep.subr.mxu0 0.0
  %1200 = vmatpush1.msra.mxu0 %v1078
  %1201 = vmatprep.subr.mxu0 0.0
  %1202 = vmatpush1.msra.mxu0 %v1079
  %1203 = vmatprep.subr.mxu0 0.0
  %1204 = vmatpush1.msra.mxu0 %v1080
  %1205 = vmatprep.subr.mxu0 0.0
  %1206 = vmatpush1.msra.mxu0 %v1081
  %1207 = vmatprep.subr.mxu0 0.0
  %1208 = vmatpush1.msra.mxu0 %v1082
  %1209 = vmatprep.subr.mxu0 0.0
  %1210 = vmatpush1.msra.mxu0 %v1083
  %1211 = vmatprep.subr.mxu0 0.0
  %1212 = vmatpush1.msra.mxu0 %v1084
  %1213 = vmatprep.subr.mxu0 0.0
  %1214 = vmatpush1.msra.mxu0 %v1085
  %1215 = vmatprep.subr.mxu0 0.0
  %1216 = vmatpush1.msra.mxu0 %v1086
  %1217 = vmatprep.subr.mxu0 0.0
  %1218 = vmatpush1.msra.mxu0 %v1087
  %1219 = vmatprep.subr.mxu0 0.0
  %1220 = vmatpush1.msra.mxu0 %v1088
  %1221 = vmatprep.subr.mxu0 0.0
  %1222 = vmatpush1.msra.mxu0 %v1089
  %1223 = vmatprep.subr.mxu0 0.0
  %1224 = vmatpush1.msra.mxu0 %v1090
  %1225 = vmatprep.subr.mxu0 0.0
  %1226 = vmatpush1.msra.mxu0 %v1091
  %1227 = vmatprep.subr.mxu0 0.0
  %1228 = vmatpush1.msra.mxu0 %v1092
  %1229 = vmatprep.subr.mxu0 0.0
  %1230 = vmatpush1.msra.mxu0 %v1093
  %1231 = vmatprep.subr.mxu0 0.0
  %1232 = vmatpush1.msra.mxu0 %v1094
  %1233 = vmatprep.subr.mxu0 0.0
  %1234 = vmatpush1.msra.mxu0 %v1095
  %1235 = vmatprep.subr.mxu0 0.0
  %1236 = vmatpush1.msra.mxu0 %v1096
  %1237 = vmatprep.mubr.f32.mxu0 %v1031
  %1238 = vmatmul.mubr.f32.gmra.mrb[0].mxu0 %v1029
  %v1239 = vpop.f32.mrb[0].mxu0
  %v1240 = vadd.f32 %v1170, %v1239
  %v1241 = vpop.f32.mrb[0].mxu0
  %1242 = vdwg.mxu0
  %1243 = vst [vmem:[%s7] sm:$0xff] %v1240
  // Predicated region
  $region30: #{resnet_block_forward.1} parent=0 // pred_check
    _
  $region31: #{resnet_block_forward.1} parent=0 // pred_check_branch
    %1245 = sbr.rel (0) target = $region33
  $region32: #{resnet_block_forward.1} parent=0 // pred_region
    _
  $region33: #{resnet_block_forward.1} parent=0 // pred_fallthru
    _
  // Predicated region
  $region34: #{resnet_block_forward.1} parent=0 // pred_check
    _
  $region35: #{resnet_block_forward.1} parent=0 // pred_check_branch
    %1247 = sbr.rel (0) target = $region37
  $region36: #{resnet_block_forward.1} parent=0 // pred_region
    _
  $region37: #{resnet_block_forward.1} parent=0 // pred_fallthru
    _

</llo_original>
